<compile_context>
chip_gen: v7x
topology: tpu7x:2x2x1
jax: 0.10.0
libtpu: 0.0.40
codegen_flags: <defaults>
</compile_context>

<pallas_src>
import jax
import jax.numpy as jnp
import numpy as np
from jax.experimental import pallas as pl
from jax.experimental.pallas import tpu as pltpu

EPS = 1e-5
POOL = 441
K1, S1 = 10, 10          # conv1: kernel 10, stride 10, pad 0
K2, S2, P2 = 12, 4, 4    # conv2: kernel 12, stride 4, pad 4
K3, P3 = 5, 2            # conv3: kernel 5, stride 1, pad 2


def _full_spec(shape):
    # Tiny shapes; one grid step with full-array blocks
    # (block_shape == array shape satisfies the (8,128) rule).
    return pl.BlockSpec(shape, lambda i, _r=len(shape): (0,) * _r)


def _bn_relu(y, gamma, beta):
    # Training-mode BatchNorm1d (batch stats, biased variance) + ReLU.
    mean = jnp.mean(y, axis=0, keepdims=True)
    var = jnp.mean((y - mean) ** 2, axis=0, keepdims=True)
    y = (y - mean) * jax.lax.rsqrt(var + EPS)
    return jnp.maximum(y * gamma + beta, 0.0)


def _make_kernel(n2, n3):
    # n2 = B*L3 (rows per conv2 tap), n3 = B*L4 (rows per conv3 tap).
    def kernel(x_ref, w1_ref, g1_ref, be1_ref, s2_ref, w2_ref, g2_ref, be2_ref,
               s3_ref, w3l_ref, b3l_ref, o_ref):
        # abs + MaxPool1d(441, 441): pool windows were pre-grouped per conv1 tap
        # on the host (free reshape), so the reduce feeds conv1 directly.
        pooled = jnp.max(jnp.abs(x_ref[...]), axis=-1)              # (B*L2, K1)

        # Conv1d(1->C, k=10, s=10) + BN + ReLU.  Conv bias omitted: it cancels
        # exactly under the BN mean subtraction.  Kept in f32 (see header note).
        y1 = jnp.dot(pooled, w1_ref[...], preferred_element_type=jnp.float32)
        h1 = _bn_relu(y1, g1_ref[...], be1_ref[...])                # (B*L2, C)

        # Conv1d(C->2C, k=12, s=4, p=4) + BN + ReLU.
        # In-VMEM im2col: a constant 0/1 selector matmul gathers the
        # (zero-padded) input rows for every tap, a lane-concat builds the
        # (rows, K2*C) patch matrix, then one MXU matmul with the weights.
        a2 = jnp.dot(s2_ref[...], h1, preferred_element_type=jnp.float32)
        p2 = jnp.concatenate([a2[j * n2:(j + 1) * n2, :] for j in range(K2)],
                             axis=1)                                # (B*L3, K2*C)
        y2 = jnp.dot(p2.astype(jnp.bfloat16), w2_ref[...],
                     preferred_element_type=jnp.float32)            # (B*L3, 2C)
        h2 = _bn_relu(y2, g2_ref[...], be2_ref[...])

        # Conv1d(2C->C, k=5, s=1, p=2) fused with Linear(C->D): one matmul with
        # the host-fused (K3*2C, D) weight, lane-dense (…,256) output.
        a3 = jnp.dot(s3_ref[...], h2, preferred_element_type=jnp.float32)
        p3 = jnp.concatenate([a3[j * n3:(j + 1) * n3, :] for j in range(K3)],
                             axis=1)                                # (B*L4, K3*2C)
        o_ref[...] = jnp.dot(p3.astype(jnp.bfloat16), w3l_ref[...],
                             preferred_element_type=jnp.float32) + b3l_ref[...]

    return kernel


def _selector(num_taps, batch, out_len, in_len, stride, pad):
    # Constant 0/1 row-gather matrix implementing zero-padded im2col row
    # selection: rows ordered (tap, batch, out_pos), cols (batch, in_pos).
    s = np.zeros((num_taps * batch * out_len, batch * in_len), np.float32)
    for j in range(num_taps):
        for b in range(batch):
            for t in range(out_len):
                src = stride * t + j - pad
                if 0 <= src < in_len:
                    s[j * batch * out_len + b * out_len + t, b * in_len + src] = 1.0
    return jnp.asarray(s)


def init_params(key, input_channels=1, conv_channels=32, transformer_dim=256):
    keys = jax.random.split(key, 8)

    def uinit(k, shape, fan_in):
        bound = 1.0 / np.sqrt(fan_in)
        return jax.random.uniform(k, shape, jnp.float32, -bound, bound)

    C, D = conv_channels, transformer_dim
    p = {}
    p["w1"] = uinit(keys[0], (C, input_channels, K1), input_channels * K1)
    p["b1"] = uinit(keys[1], (C,), input_channels * K1)
    p["g1"] = jnp.ones((C,), jnp.float32)
    p["be1"] = jnp.zeros((C,), jnp.float32)
    p["w2"] = uinit(keys[2], (2 * C, C, K2), C * K2)
    p["b2"] = uinit(keys[3], (2 * C,), C * K2)
    p["g2"] = jnp.ones((2 * C,), jnp.float32)
    p["be2"] = jnp.zeros((2 * C,), jnp.float32)
    p["w3"] = uinit(keys[4], (C, 2 * C, K3), 2 * C * K3)
    p["b3"] = uinit(keys[5], (C,), 2 * C * K3)
    p["wl"] = uinit(keys[6], (D, C), C)
    p["bl"] = uinit(keys[7], (D,), C)
    return p


def audio_encoder_forward(params, x):
    B, L = x.shape
    C = params["w1"].shape[0]
    D = params["wl"].shape[0]

    L1 = L // POOL
    L2 = (L1 - K1) // S1 + 1
    L3 = (L2 + 2 * P2 - K2) // S2 + 1
    L4 = L3 + 2 * P3 - K3 + 1

    # (B, L) -> (B*L2, K1, POOL): each row holds the K1 pool windows feeding one
    # conv1 output position.  Contiguous reshape => no host gather / copy.
    xw = x[:, : L2 * K1 * POOL].reshape(B * L2, K1, POOL)

    # One-time weight prep (tiny; would be precomputed offline in deployment).
    w1m = params["w1"].reshape(C, -1).T                                  # (K1, C)
    w2m = jnp.transpose(params["w2"], (2, 1, 0)).reshape(K2 * C, 2 * C)  # (K2*C, 2C)
    w2m = w2m.astype(jnp.bfloat16)
    w3m = jnp.transpose(params["w3"], (2, 1, 0)).reshape(K3 * 2 * C, C)  # (K3*2C, C)
    wlm = params["wl"].T                                                 # (C, D)
    w3l = jnp.dot(w3m, wlm,
                  precision=jax.lax.Precision.HIGHEST).astype(jnp.bfloat16)
    b3l = (jnp.dot(params["b3"], wlm, precision=jax.lax.Precision.HIGHEST)
           + params["bl"])[None, :]                                      # (1, D)

    s2 = _selector(K2, B, L3, L2, S2, P2)    # (K2*B*L3, B*L2)
    s3 = _selector(K3, B, L4, L3, 1, P3)     # (K3*B*L4, B*L3)

    args = (xw, w1m,
            params["g1"][None, :], params["be1"][None, :],
            s2, w2m, params["g2"][None, :], params["be2"][None, :],
            s3, w3l, b3l)

    out = pl.pallas_call(
        _make_kernel(B * L3, B * L4),
        out_shape=jax.ShapeDtypeStruct((B * L4, D), jnp.float32),
        grid=(1,),
        in_specs=[_full_spec(a.shape) for a in args],
        out_specs=_full_spec((B * L4, D)),
        compiler_params=pltpu.CompilerParams(
            dimension_semantics=("arbitrary",),
            vmem_limit_bytes=32 * 1024 * 1024),
    )(*args)
    return out.reshape(B, L4, D)


# Pure-JAX reference (same math as the PyTorch module) for a correctness check.
def reference_forward(params, x):
    B, L = x.shape
    xa = jnp.abs(x)[:, None, :]
    L1 = L // POOL
    h = jnp.max(xa[:, :, : L1 * POOL].reshape(B, 1, L1, POOL), axis=-1)

    def conv1d(h, w, b, stride, pad):
        dn = jax.lax.conv_dimension_numbers(h.shape, w.shape, ("NCH", "OIH", "NCH"))
        y = jax.lax.conv_general_dilated(h, w, (stride,), [(pad, pad)],
                                         dimension_numbers=dn,
                                         precision=jax.lax.Precision.HIGHEST)
        return y + b[None, :, None]

    def bn_relu(h, g, be):
        mean = jnp.mean(h, axis=(0, 2), keepdims=True)
        var = jnp.mean((h - mean) ** 2, axis=(0, 2), keepdims=True)
        h = (h - mean) * jax.lax.rsqrt(var + EPS)
        return jnp.maximum(h * g[None, :, None] + be[None, :, None], 0.0)

    h = bn_relu(conv1d(h, params["w1"], params["b1"], S1, 0), params["g1"], params["be1"])
    h = bn_relu(conv1d(h, params["w2"], params["b2"], S2, P2), params["g2"], params["be2"])
    h = conv1d(h, params["w3"], params["b3"], 1, P3)
    h = jnp.transpose(h, (0, 2, 1))
    return jnp.dot(h, params["wl"].T, precision=jax.lax.Precision.HIGHEST) + params["bl"]


if __name__ == "__main__":
    key = jax.random.PRNGKey(0)
    kx, kp = jax.random.split(key)
    B, L = 2, 441 * 160          # pool->160, conv1->16, conv2->4, conv3->4 frames
    x = jax.random.normal(kx, (B, L), jnp.float32)
    params = init_params(kp)

    fwd = jax.jit(audio_encoder_forward)
    out = jax.block_until_ready(fwd(params, x))
    assert out.shape == (B, 4, 256), out.shape

    ref = reference_forward(params, x)
    np.testing.assert_allclose(np.asarray(out), np.asarray(ref), rtol=3e-2, atol=3e-2)

    print("KERNEL_OK")
</pallas_src>

<mosaic_0001>
module attributes {stable_mosaic.version = 11 : i64} {
  func.func @kernel(%arg0: i32, %arg1: memref<32x10x441xf32, #tpu.memory_space<vmem>>, %arg2: memref<10x32xf32, #tpu.memory_space<vmem>>, %arg3: memref<1x32xf32, #tpu.memory_space<vmem>>, %arg4: memref<1x32xf32, #tpu.memory_space<vmem>>, %arg5: memref<96x32xf32, #tpu.memory_space<vmem>>, %arg6: memref<384x64xbf16, #tpu.memory_space<vmem>>, %arg7: memref<1x64xf32, #tpu.memory_space<vmem>>, %arg8: memref<1x64xf32, #tpu.memory_space<vmem>>, %arg9: memref<40x8xf32, #tpu.memory_space<vmem>>, %arg10: memref<320x256xbf16, #tpu.memory_space<vmem>>, %arg11: memref<1x256xf32, #tpu.memory_space<vmem>>, %arg12: memref<8x256xf32, #tpu.memory_space<vmem>>) attributes {dimension_semantics = [#tpu.dimension_semantics<arbitrary>], iteration_bounds = array<i64: 1>, scalar_prefetch = 0 : i64, scratch_operands = 0 : i64, tpu.core_type = #tpu.core_type<tc>, window_params = [{pipeline_mode = #tpu.pipeline_mode<synchronous>, transform_indices = @transform_0, window_bounds = array<i64: 32, 10, 441>}, {pipeline_mode = #tpu.pipeline_mode<synchronous>, transform_indices = @transform_1, window_bounds = array<i64: 10, 32>}, {pipeline_mode = #tpu.pipeline_mode<synchronous>, transform_indices = @transform_2, window_bounds = array<i64: 1, 32>}, {pipeline_mode = #tpu.pipeline_mode<synchronous>, transform_indices = @transform_3, window_bounds = array<i64: 1, 32>}, {pipeline_mode = #tpu.pipeline_mode<synchronous>, transform_indices = @transform_4, window_bounds = array<i64: 96, 32>}, {pipeline_mode = #tpu.pipeline_mode<synchronous>, transform_indices = @transform_5, window_bounds = array<i64: 384, 64>}, {pipeline_mode = #tpu.pipeline_mode<synchronous>, transform_indices = @transform_6, window_bounds = array<i64: 1, 64>}, {pipeline_mode = #tpu.pipeline_mode<synchronous>, transform_indices = @transform_7, window_bounds = array<i64: 1, 64>}, {pipeline_mode = #tpu.pipeline_mode<synchronous>, transform_indices = @transform_8, window_bounds = array<i64: 40, 8>}, {pipeline_mode = #tpu.pipeline_mode<synchronous>, transform_indices = @transform_9, window_bounds = array<i64: 320, 256>}, {pipeline_mode = #tpu.pipeline_mode<synchronous>, transform_indices = @transform_10, window_bounds = array<i64: 1, 256>}, {pipeline_mode = #tpu.pipeline_mode<synchronous>, transform_indices = @transform_11, window_bounds = array<i64: 8, 256>}]} {
    %c0 = arith.constant 0 : index
    %c0_0 = arith.constant 0 : index
    %c0_1 = arith.constant 0 : index
    %0 = vector.load %arg1[%c0, %c0_0, %c0_1] : memref<32x10x441xf32, #tpu.memory_space<vmem>>, vector<32x10x441xf32>
    %1 = math.absf %0 : vector<32x10x441xf32>
    %cst = arith.constant dense<0xFF800000> : vector<32x10xf32>
    %2 = vector.multi_reduction <maximumf>, %1, %cst [2] : vector<32x10x441xf32> to vector<32x10xf32>
    %c0_2 = arith.constant 0 : index
    %c0_3 = arith.constant 0 : index
    %3 = vector.load %arg2[%c0_2, %c0_3] : memref<10x32xf32, #tpu.memory_space<vmem>>, vector<10x32xf32>
    %cst_4 = arith.constant dense<0.000000e+00> : vector<32x32xf32>
    %4 = tpu.matmul %2, %3, %cst_4 {dimension_numbers = #tpu.dot_dimension_numbers<[1], [0], [0], [1], [0, 0, 1, 1], [], []>} : vector<32x10xf32>, vector<10x32xf32>, vector<32x32xf32> -> vector<32x32xf32>
    %c0_5 = arith.constant 0 : index
    %c0_6 = arith.constant 0 : index
    %5 = vector.load %arg3[%c0_5, %c0_6] : memref<1x32xf32, #tpu.memory_space<vmem>>, vector<1x32xf32>
    %c0_7 = arith.constant 0 : index
    %c0_8 = arith.constant 0 : index
    %6 = vector.load %arg4[%c0_7, %c0_8] : memref<1x32xf32, #tpu.memory_space<vmem>>, vector<1x32xf32>
    %cst_9 = arith.constant dense<0.000000e+00> : vector<32xf32>
    %7 = vector.multi_reduction <add>, %4, %cst_9 [0] : vector<32x32xf32> to vector<32xf32>
    %8 = vector.shape_cast %7 : vector<32xf32> to vector<1x32xf32>
    %cst_10 = arith.constant 3.200000e+01 : f32
    %9 = vector.broadcast %cst_10 : f32 to vector<1x32xf32>
    %10 = arith.divf %8, %9 : vector<1x32xf32>
    %11 = vector.broadcast %10 : vector<1x32xf32> to vector<32x32xf32>
    %12 = arith.subf %4, %11 : vector<32x32xf32>
    %13 = arith.mulf %12, %12 : vector<32x32xf32>
    %cst_11 = arith.constant dense<0.000000e+00> : vector<32xf32>
    %14 = vector.multi_reduction <add>, %13, %cst_11 [0] : vector<32x32xf32> to vector<32xf32>
    %15 = vector.shape_cast %14 : vector<32xf32> to vector<1x32xf32>
    %cst_12 = arith.constant 3.200000e+01 : f32
    %16 = vector.broadcast %cst_12 : f32 to vector<1x32xf32>
    %17 = arith.divf %15, %16 : vector<1x32xf32>
    %18 = vector.broadcast %10 : vector<1x32xf32> to vector<32x32xf32>
    %19 = arith.subf %4, %18 : vector<32x32xf32>
    %cst_13 = arith.constant 9.99999974E-6 : f32
    %20 = vector.broadcast %cst_13 : f32 to vector<1x32xf32>
    %21 = arith.addf %17, %20 : vector<1x32xf32>
    %22 = math.rsqrt %21 : vector<1x32xf32>
    %23 = vector.broadcast %22 : vector<1x32xf32> to vector<32x32xf32>
    %24 = arith.mulf %19, %23 : vector<32x32xf32>
    %25 = vector.broadcast %5 : vector<1x32xf32> to vector<32x32xf32>
    %26 = arith.mulf %24, %25 : vector<32x32xf32>
    %27 = vector.broadcast %6 : vector<1x32xf32> to vector<32x32xf32>
    %28 = arith.addf %26, %27 : vector<32x32xf32>
    %cst_14 = arith.constant 0.000000e+00 : f32
    %29 = vector.broadcast %cst_14 : f32 to vector<32x32xf32>
    %30 = arith.maximumf %28, %29 : vector<32x32xf32>
    %c0_15 = arith.constant 0 : index
    %c0_16 = arith.constant 0 : index
    %31 = vector.load %arg5[%c0_15, %c0_16] : memref<96x32xf32, #tpu.memory_space<vmem>>, vector<96x32xf32>
    %cst_17 = arith.constant dense<0.000000e+00> : vector<96x32xf32>
    %32 = tpu.matmul %31, %30, %cst_17 {dimension_numbers = #tpu.dot_dimension_numbers<[1], [0], [0], [1], [0, 0, 1, 1], [], []>} : vector<96x32xf32>, vector<32x32xf32>, vector<96x32xf32> -> vector<96x32xf32>
    %33 = vector.extract_strided_slice %32 {offsets = [0, 0], sizes = [8, 32], strides = [1, 1]} : vector<96x32xf32> to vector<8x32xf32>
    %34 = vector.extract_strided_slice %32 {offsets = [8, 0], sizes = [8, 32], strides = [1, 1]} : vector<96x32xf32> to vector<8x32xf32>
    %35 = vector.extract_strided_slice %32 {offsets = [16, 0], sizes = [8, 32], strides = [1, 1]} : vector<96x32xf32> to vector<8x32xf32>
    %36 = vector.extract_strided_slice %32 {offsets = [24, 0], sizes = [8, 32], strides = [1, 1]} : vector<96x32xf32> to vector<8x32xf32>
    %37 = vector.extract_strided_slice %32 {offsets = [32, 0], sizes = [8, 32], strides = [1, 1]} : vector<96x32xf32> to vector<8x32xf32>
    %38 = vector.extract_strided_slice %32 {offsets = [40, 0], sizes = [8, 32], strides = [1, 1]} : vector<96x32xf32> to vector<8x32xf32>
    %39 = vector.extract_strided_slice %32 {offsets = [48, 0], sizes = [8, 32], strides = [1, 1]} : vector<96x32xf32> to vector<8x32xf32>
    %40 = vector.extract_strided_slice %32 {offsets = [56, 0], sizes = [8, 32], strides = [1, 1]} : vector<96x32xf32> to vector<8x32xf32>
    %41 = vector.extract_strided_slice %32 {offsets = [64, 0], sizes = [8, 32], strides = [1, 1]} : vector<96x32xf32> to vector<8x32xf32>
    %42 = vector.extract_strided_slice %32 {offsets = [72, 0], sizes = [8, 32], strides = [1, 1]} : vector<96x32xf32> to vector<8x32xf32>
    %43 = vector.extract_strided_slice %32 {offsets = [80, 0], sizes = [8, 32], strides = [1, 1]} : vector<96x32xf32> to vector<8x32xf32>
    %44 = vector.extract_strided_slice %32 {offsets = [88, 0], sizes = [8, 32], strides = [1, 1]} : vector<96x32xf32> to vector<8x32xf32>
    %45 = tpu.concatenate %33, %34, %35, %36, %37, %38, %39, %40, %41, %42, %43, %44 in 1 : vector<8x32xf32>, vector<8x32xf32>, vector<8x32xf32>, vector<8x32xf32>, vector<8x32xf32>, vector<8x32xf32>, vector<8x32xf32>, vector<8x32xf32>, vector<8x32xf32>, vector<8x32xf32>, vector<8x32xf32>, vector<8x32xf32> -> vector<8x384xf32>
    %46 = arith.truncf %45 : vector<8x384xf32> to vector<8x384xbf16>
    %c0_18 = arith.constant 0 : index
    %c0_19 = arith.constant 0 : index
    %47 = vector.load %arg6[%c0_18, %c0_19] : memref<384x64xbf16, #tpu.memory_space<vmem>>, vector<384x64xbf16>
    %cst_20 = arith.constant dense<0.000000e+00> : vector<8x64xf32>
    %48 = tpu.matmul %46, %47, %cst_20 {dimension_numbers = #tpu.dot_dimension_numbers<[1], [0], [0], [1], [0, 0, 1, 1], [], []>} : vector<8x384xbf16>, vector<384x64xbf16>, vector<8x64xf32> -> vector<8x64xf32>
    %c0_21 = arith.constant 0 : index
    %c0_22 = arith.constant 0 : index
    %49 = vector.load %arg7[%c0_21, %c0_22] : memref<1x64xf32, #tpu.memory_space<vmem>>, vector<1x64xf32>
    %c0_23 = arith.constant 0 : index
    %c0_24 = arith.constant 0 : index
    %50 = vector.load %arg8[%c0_23, %c0_24] : memref<1x64xf32, #tpu.memory_space<vmem>>, vector<1x64xf32>
    %cst_25 = arith.constant dense<0.000000e+00> : vector<64xf32>
    %51 = vector.multi_reduction <add>, %48, %cst_25 [0] : vector<8x64xf32> to vector<64xf32>
    %52 = vector.shape_cast %51 : vector<64xf32> to vector<1x64xf32>
    %cst_26 = arith.constant 8.000000e+00 : f32
    %53 = vector.broadcast %cst_26 : f32 to vector<1x64xf32>
    %54 = arith.divf %52, %53 : vector<1x64xf32>
    %55 = vector.broadcast %54 : vector<1x64xf32> to vector<8x64xf32>
    %56 = arith.subf %48, %55 : vector<8x64xf32>
    %57 = arith.mulf %56, %56 : vector<8x64xf32>
    %cst_27 = arith.constant dense<0.000000e+00> : vector<64xf32>
    %58 = vector.multi_reduction <add>, %57, %cst_27 [0] : vector<8x64xf32> to vector<64xf32>
    %59 = vector.shape_cast %58 : vector<64xf32> to vector<1x64xf32>
    %cst_28 = arith.constant 8.000000e+00 : f32
    %60 = vector.broadcast %cst_28 : f32 to vector<1x64xf32>
    %61 = arith.divf %59, %60 : vector<1x64xf32>
    %62 = vector.broadcast %54 : vector<1x64xf32> to vector<8x64xf32>
    %63 = arith.subf %48, %62 : vector<8x64xf32>
    %cst_29 = arith.constant 9.99999974E-6 : f32
    %64 = vector.broadcast %cst_29 : f32 to vector<1x64xf32>
    %65 = arith.addf %61, %64 : vector<1x64xf32>
    %66 = math.rsqrt %65 : vector<1x64xf32>
    %67 = vector.broadcast %66 : vector<1x64xf32> to vector<8x64xf32>
    %68 = arith.mulf %63, %67 : vector<8x64xf32>
    %69 = vector.broadcast %49 : vector<1x64xf32> to vector<8x64xf32>
    %70 = arith.mulf %68, %69 : vector<8x64xf32>
    %71 = vector.broadcast %50 : vector<1x64xf32> to vector<8x64xf32>
    %72 = arith.addf %70, %71 : vector<8x64xf32>
    %cst_30 = arith.constant 0.000000e+00 : f32
    %73 = vector.broadcast %cst_30 : f32 to vector<8x64xf32>
    %74 = arith.maximumf %72, %73 : vector<8x64xf32>
    %c0_31 = arith.constant 0 : index
    %c0_32 = arith.constant 0 : index
    %75 = vector.load %arg9[%c0_31, %c0_32] : memref<40x8xf32, #tpu.memory_space<vmem>>, vector<40x8xf32>
    %cst_33 = arith.constant dense<0.000000e+00> : vector<40x64xf32>
    %76 = tpu.matmul %75, %74, %cst_33 {dimension_numbers = #tpu.dot_dimension_numbers<[1], [0], [0], [1], [0, 0, 1, 1], [], []>} : vector<40x8xf32>, vector<8x64xf32>, vector<40x64xf32> -> vector<40x64xf32>
    %77 = vector.extract_strided_slice %76 {offsets = [0, 0], sizes = [8, 64], strides = [1, 1]} : vector<40x64xf32> to vector<8x64xf32>
    %78 = vector.extract_strided_slice %76 {offsets = [8, 0], sizes = [8, 64], strides = [1, 1]} : vector<40x64xf32> to vector<8x64xf32>
    %79 = vector.extract_strided_slice %76 {offsets = [16, 0], sizes = [8, 64], strides = [1, 1]} : vector<40x64xf32> to vector<8x64xf32>
    %80 = vector.extract_strided_slice %76 {offsets = [24, 0], sizes = [8, 64], strides = [1, 1]} : vector<40x64xf32> to vector<8x64xf32>
    %81 = vector.extract_strided_slice %76 {offsets = [32, 0], sizes = [8, 64], strides = [1, 1]} : vector<40x64xf32> to vector<8x64xf32>
    %82 = tpu.concatenate %77, %78, %79, %80, %81 in 1 : vector<8x64xf32>, vector<8x64xf32>, vector<8x64xf32>, vector<8x64xf32>, vector<8x64xf32> -> vector<8x320xf32>
    %83 = arith.truncf %82 : vector<8x320xf32> to vector<8x320xbf16>
    %c0_34 = arith.constant 0 : index
    %c0_35 = arith.constant 0 : index
    %84 = vector.load %arg10[%c0_34, %c0_35] : memref<320x256xbf16, #tpu.memory_space<vmem>>, vector<320x256xbf16>
    %cst_36 = arith.constant dense<0.000000e+00> : vector<8x256xf32>
    %85 = tpu.matmul %83, %84, %cst_36 {dimension_numbers = #tpu.dot_dimension_numbers<[1], [0], [0], [1], [0, 0, 1, 1], [], []>} : vector<8x320xbf16>, vector<320x256xbf16>, vector<8x256xf32> -> vector<8x256xf32>
    %c0_37 = arith.constant 0 : index
    %c0_38 = arith.constant 0 : index
    %86 = vector.load %arg11[%c0_37, %c0_38] : memref<1x256xf32, #tpu.memory_space<vmem>>, vector<1x256xf32>
    %87 = vector.broadcast %86 : vector<1x256xf32> to vector<8x256xf32>
    %88 = arith.addf %85, %87 : vector<8x256xf32>
    %c0_39 = arith.constant 0 : index
    %c0_40 = arith.constant 0 : index
    %89 = vector.load %arg12[%c0_39, %c0_40] : memref<8x256xf32, #tpu.memory_space<vmem>>, vector<8x256xf32>
    tpu.vector_store %arg12[%c0_39, %c0_40], %88 {strides = array<i32>} : memref<8x256xf32, #tpu.memory_space<vmem>>, vector<8x256xf32>,
    return
  }
  func.func @transform_0(%arg0: i32) -> (i32, i32, i32) {
    %c0_i32 = arith.constant 0 : i32
    %c0_i32_0 = arith.constant 0 : i32
    %c0_i32_1 = arith.constant 0 : i32
    %c0_i32_2 = arith.constant 0 : i32
    return %c0_i32, %c0_i32_0, %c0_i32_1 : i32, i32, i32
  }
  func.func @transform_1(%arg0: i32) -> (i32, i32) {
    %c0_i32 = arith.constant 0 : i32
    %c0_i32_0 = arith.constant 0 : i32
    %c0_i32_1 = arith.constant 0 : i32
    return %c0_i32, %c0_i32_0 : i32, i32
  }
  func.func @transform_2(%arg0: i32) -> (i32, i32) {
    %c0_i32 = arith.constant 0 : i32
    %c0_i32_0 = arith.constant 0 : i32
    %c0_i32_1 = arith.constant 0 : i32
    return %c0_i32, %c0_i32_0 : i32, i32
  }
  func.func @transform_3(%arg0: i32) -> (i32, i32) {
    %c0_i32 = arith.constant 0 : i32
    %c0_i32_0 = arith.constant 0 : i32
    %c0_i32_1 = arith.constant 0 : i32
    return %c0_i32, %c0_i32_0 : i32, i32
  }
  func.func @transform_4(%arg0: i32) -> (i32, i32) {
    %c0_i32 = arith.constant 0 : i32
    %c0_i32_0 = arith.constant 0 : i32
    %c0_i32_1 = arith.constant 0 : i32
    return %c0_i32, %c0_i32_0 : i32, i32
  }
  func.func @transform_5(%arg0: i32) -> (i32, i32) {
    %c0_i32 = arith.constant 0 : i32
    %c0_i32_0 = arith.constant 0 : i32
    %c0_i32_1 = arith.constant 0 : i32
    return %c0_i32, %c0_i32_0 : i32, i32
  }
  func.func @transform_6(%arg0: i32) -> (i32, i32) {
    %c0_i32 = arith.constant 0 : i32
    %c0_i32_0 = arith.constant 0 : i32
    %c0_i32_1 = arith.constant 0 : i32
    return %c0_i32, %c0_i32_0 : i32, i32
  }
  func.func @transform_7(%arg0: i32) -> (i32, i32) {
    %c0_i32 = arith.constant 0 : i32
    %c0_i32_0 = arith.constant 0 : i32
    %c0_i32_1 = arith.constant 0 : i32
    return %c0_i32, %c0_i32_0 : i32, i32
  }
  func.func @transform_8(%arg0: i32) -> (i32, i32) {
    %c0_i32 = arith.constant 0 : i32
    %c0_i32_0 = arith.constant 0 : i32
    %c0_i32_1 = arith.constant 0 : i32
    return %c0_i32, %c0_i32_0 : i32, i32
  }
  func.func @transform_9(%arg0: i32) -> (i32, i32) {
    %c0_i32 = arith.constant 0 : i32
    %c0_i32_0 = arith.constant 0 : i32
    %c0_i32_1 = arith.constant 0 : i32
    return %c0_i32, %c0_i32_0 : i32, i32
  }
  func.func @transform_10(%arg0: i32) -> (i32, i32) {
    %c0_i32 = arith.constant 0 : i32
    %c0_i32_0 = arith.constant 0 : i32
    %c0_i32_1 = arith.constant 0 : i32
    return %c0_i32, %c0_i32_0 : i32, i32
  }
  func.func @transform_11(%arg0: i32) -> (i32, i32) {
    %c0_i32 = arith.constant 0 : i32
    %c0_i32_0 = arith.constant 0 : i32
    %c0_i32_1 = arith.constant 0 : i32
    return %c0_i32, %c0_i32_0 : i32, i32
  }
}

</mosaic_0001>

<llo_original>
// kernel: audio_encoder_forward.1
$region0: #{audio_encoder_forward.1}
  #allocation0 [shape = 'u32[]', space=smem, size = 0x4, offset = 0x4, fixed_abs, tag = 'smem constant byte address 0x4 - core index']
  #allocation1 [shape = 'u32[144,128]{1,0:T(1,128)}', space=vmem, size = 0x12000, scoped, tag = 'internal scratch']
  %s0 = inlined_call_operand.vmem [shape: f32[32,10,441], index: 0, kind: input, shape index: {}]
  %s1 = inlined_call_operand.vmem [shape: f32[10,32], index: 1, kind: input, shape index: {}]
  %s2 = inlined_call_operand.vmem [shape: f32[1,32], index: 2, kind: input, shape index: {}]
  %s3 = inlined_call_operand.vmem [shape: f32[1,32], index: 3, kind: input, shape index: {}]
  %s4 = inlined_call_operand.vmem [shape: f32[96,32], index: 4, kind: input, shape index: {}]
  %s5 = inlined_call_operand.vmem [shape: bf16[384,64], index: 5, kind: input, shape index: {}]
  %s6 = inlined_call_operand.vmem [shape: f32[1,64], index: 6, kind: input, shape index: {}]
  %s7 = inlined_call_operand.vmem [shape: f32[1,64], index: 7, kind: input, shape index: {}]
  %s8 = inlined_call_operand.vmem [shape: f32[40,8], index: 8, kind: input, shape index: {}]
  %s9 = inlined_call_operand.vmem [shape: bf16[320,256], index: 9, kind: input, shape index: {}]
  %s10 = inlined_call_operand.vmem [shape: f32[1,256], index: 10, kind: input, shape index: {}]
  %s11 = inlined_call_operand.vmem [shape: f32[8,256], index: 11, kind: output, shape index: {}]
  %s12 = sld [smem:[#allocation0]]
  $region54: #{audio_encoder_forward.1} parent=0
    _
  %s14 = ssub.s32 1, %s12
  %s15 = scalar_select 0, %s14, %s12
  // Predicated region
  $region2: #{audio_encoder_forward.1} parent=0 // pred_check
    _
  $region3: #{audio_encoder_forward.1} parent=0 // pred_check_branch
    %17 = sbr.rel (0) target = $region5
  $region4: #{audio_encoder_forward.1} parent=0 // pred_region
    _
  $region5: #{audio_encoder_forward.1} parent=0 // pred_fallthru
    _
  // Predicated region
  $region6: #{audio_encoder_forward.1} parent=0 // pred_check
    _
  $region7: #{audio_encoder_forward.1} parent=0 // pred_check_branch
    %19 = sbr.rel (0) target = $region9
  $region8: #{audio_encoder_forward.1} parent=0 // pred_region
    _
  $region9: #{audio_encoder_forward.1} parent=0 // pred_fallthru
    _
  // Predicated region
  $region10: #{audio_encoder_forward.1} parent=0 // pred_check
    _
  $region11: #{audio_encoder_forward.1} parent=0 // pred_check_branch
    %21 = sbr.rel (0) target = $region13
  $region12: #{audio_encoder_forward.1} parent=0 // pred_region
    _
  $region13: #{audio_encoder_forward.1} parent=0 // pred_fallthru
    _
  // Predicated region
  $region14: #{audio_encoder_forward.1} parent=0 // pred_check
    _
  $region15: #{audio_encoder_forward.1} parent=0 // pred_check_branch
    %23 = sbr.rel (0) target = $region17
  $region16: #{audio_encoder_forward.1} parent=0 // pred_region
    _
  $region17: #{audio_encoder_forward.1} parent=0 // pred_fallthru
    _
  // Predicated region
  $region18: #{audio_encoder_forward.1} parent=0 // pred_check
    _
  $region19: #{audio_encoder_forward.1} parent=0 // pred_check_branch
    %25 = sbr.rel (0) target = $region21
  $region20: #{audio_encoder_forward.1} parent=0 // pred_region
    _
  $region21: #{audio_encoder_forward.1} parent=0 // pred_fallthru
    _
  // Predicated region
  $region22: #{audio_encoder_forward.1} parent=0 // pred_check
    _
  $region23: #{audio_encoder_forward.1} parent=0 // pred_check_branch
    %27 = sbr.rel (0) target = $region25
  $region24: #{audio_encoder_forward.1} parent=0 // pred_region
    _
  $region25: #{audio_encoder_forward.1} parent=0 // pred_fallthru
    _
  // Predicated region
  $region26: #{audio_encoder_forward.1} parent=0 // pred_check
    _
  $region27: #{audio_encoder_forward.1} parent=0 // pred_check_branch
    %29 = sbr.rel (0) target = $region29
  $region28: #{audio_encoder_forward.1} parent=0 // pred_region
    _
  $region29: #{audio_encoder_forward.1} parent=0 // pred_fallthru
    _
  // Predicated region
  $region30: #{audio_encoder_forward.1} parent=0 // pred_check
    _
  $region31: #{audio_encoder_forward.1} parent=0 // pred_check_branch
    %31 = sbr.rel (0) target = $region33
  $region32: #{audio_encoder_forward.1} parent=0 // pred_region
    _
  $region33: #{audio_encoder_forward.1} parent=0 // pred_fallthru
    _
  // Predicated region
  $region34: #{audio_encoder_forward.1} parent=0 // pred_check
    _
  $region35: #{audio_encoder_forward.1} parent=0 // pred_check_branch
    %33 = sbr.rel (0) target = $region37
  $region36: #{audio_encoder_forward.1} parent=0 // pred_region
    _
  $region37: #{audio_encoder_forward.1} parent=0 // pred_fallthru
    _
  // Predicated region
  $region38: #{audio_encoder_forward.1} parent=0 // pred_check
    _
  $region39: #{audio_encoder_forward.1} parent=0 // pred_check_branch
    %35 = sbr.rel (0) target = $region41
  $region40: #{audio_encoder_forward.1} parent=0 // pred_region
    _
  $region41: #{audio_encoder_forward.1} parent=0 // pred_fallthru
    _
  // Predicated region
  $region42: #{audio_encoder_forward.1} parent=0 // pred_check
    _
  $region43: #{audio_encoder_forward.1} parent=0 // pred_check_branch
    %37 = sbr.rel (0) target = $region45
  $region44: #{audio_encoder_forward.1} parent=0 // pred_region
    _
  $region45: #{audio_encoder_forward.1} parent=0 // pred_fallthru
    _
  %v39 = vld [vmem:[%s0] sm:$0xff]
  %v40 = vld [vmem:[%s0 + $0x8] sm:$0xff]
  %v41 = vld [vmem:[%s0 + $0x10] sm:$0xff]
  %v42 = vld [vmem:[%s0 + $0x18] sm:$0xff]
  %v43 = vld [vmem:[%s0 + $0x20] sm:$0x3]
  %v44 = vld [vmem:[%s0 + $0x28] sm:$0x3]
  %v45 = vld [vmem:[%s0 + $0x30] sm:$0x3]
  %v46 = vld [vmem:[%s0 + $0x38] sm:$0x3]
  %v47 = vld [vmem:[%s0 + $0x40] sm:$0xff]
  %v48 = vld [vmem:[%s0 + $0x48] sm:$0xff]
  %v49 = vld [vmem:[%s0 + $0x50] sm:$0xff]
  %v50 = vld [vmem:[%s0 + $0x58] sm:$0xff]
  %v51 = vld [vmem:[%s0 + $0x60] sm:$0x3]
  %v52 = vld [vmem:[%s0 + $0x68] sm:$0x3]
  %v53 = vld [vmem:[%s0 + $0x70] sm:$0x3]
  %v54 = vld [vmem:[%s0 + $0x78] sm:$0x3]
  %v55 = vld [vmem:[%s0 + $0x80] sm:$0xff]
  %v56 = vld [vmem:[%s0 + $0x88] sm:$0xff]
  %v57 = vld [vmem:[%s0 + $0x90] sm:$0xff]
  %v58 = vld [vmem:[%s0 + $0x98] sm:$0xff]
  %v59 = vld [vmem:[%s0 + $0xa0] sm:$0x3]
  %v60 = vld [vmem:[%s0 + $0xa8] sm:$0x3]
  %v61 = vld [vmem:[%s0 + $0xb0] sm:$0x3]
  %v62 = vld [vmem:[%s0 + $0xb8] sm:$0x3]
  %v63 = vld [vmem:[%s0 + $0xc0] sm:$0xff]
  %v64 = vld [vmem:[%s0 + $0xc8] sm:$0xff]
  %v65 = vld [vmem:[%s0 + $0xd0] sm:$0xff]
  %v66 = vld [vmem:[%s0 + $0xd8] sm:$0xff]
  %v67 = vld [vmem:[%s0 + $0xe0] sm:$0x3]
  %v68 = vld [vmem:[%s0 + $0xe8] sm:$0x3]
  %v69 = vld [vmem:[%s0 + $0xf0] sm:$0x3]
  %v70 = vld [vmem:[%s0 + $0xf8] sm:$0x3]
  %v71 = vld [vmem:[%s0 + $0x100] sm:$0xff]
  %v72 = vld [vmem:[%s0 + $0x108] sm:$0xff]
  %v73 = vld [vmem:[%s0 + $0x110] sm:$0xff]
  %v74 = vld [vmem:[%s0 + $0x118] sm:$0xff]
  %v75 = vld [vmem:[%s0 + $0x120] sm:$0x3]
  %v76 = vld [vmem:[%s0 + $0x128] sm:$0x3]
  %v77 = vld [vmem:[%s0 + $0x130] sm:$0x3]
  %v78 = vld [vmem:[%s0 + $0x138] sm:$0x3]
  %v79 = vld [vmem:[%s0 + $0x140] sm:$0xff]
  %v80 = vld [vmem:[%s0 + $0x148] sm:$0xff]
  %v81 = vld [vmem:[%s0 + $0x150] sm:$0xff]
  %v82 = vld [vmem:[%s0 + $0x158] sm:$0xff]
  %v83 = vld [vmem:[%s0 + $0x160] sm:$0x3]
  %v84 = vld [vmem:[%s0 + $0x168] sm:$0x3]
  %v85 = vld [vmem:[%s0 + $0x170] sm:$0x3]
  %v86 = vld [vmem:[%s0 + $0x178] sm:$0x3]
  %v87 = vld [vmem:[%s0 + $0x180] sm:$0xff]
  %v88 = vld [vmem:[%s0 + $0x188] sm:$0xff]
  %v89 = vld [vmem:[%s0 + $0x190] sm:$0xff]
  %v90 = vld [vmem:[%s0 + $0x198] sm:$0xff]
  %v91 = vld [vmem:[%s0 + $0x1a0] sm:$0x3]
  %v92 = vld [vmem:[%s0 + $0x1a8] sm:$0x3]
  %v93 = vld [vmem:[%s0 + $0x1b0] sm:$0x3]
  %v94 = vld [vmem:[%s0 + $0x1b8] sm:$0x3]
  %v95 = vld [vmem:[%s0 + $0x1c0] sm:$0xff]
  %v96 = vld [vmem:[%s0 + $0x1c8] sm:$0xff]
  %v97 = vld [vmem:[%s0 + $0x1d0] sm:$0xff]
  %v98 = vld [vmem:[%s0 + $0x1d8] sm:$0xff]
  %v99 = vld [vmem:[%s0 + $0x1e0] sm:$0x3]
  %v100 = vld [vmem:[%s0 + $0x1e8] sm:$0x3]
  %v101 = vld [vmem:[%s0 + $0x1f0] sm:$0x3]
  %v102 = vld [vmem:[%s0 + $0x1f8] sm:$0x3]
  %v103 = vld [vmem:[%s0 + $0x200] sm:$0xff]
  %v104 = vld [vmem:[%s0 + $0x208] sm:$0xff]
  %v105 = vld [vmem:[%s0 + $0x210] sm:$0xff]
  %v106 = vld [vmem:[%s0 + $0x218] sm:$0xff]
  %v107 = vld [vmem:[%s0 + $0x220] sm:$0x3]
  %v108 = vld [vmem:[%s0 + $0x228] sm:$0x3]
  %v109 = vld [vmem:[%s0 + $0x230] sm:$0x3]
  %v110 = vld [vmem:[%s0 + $0x238] sm:$0x3]
  %v111 = vld [vmem:[%s0 + $0x240] sm:$0xff]
  %v112 = vld [vmem:[%s0 + $0x248] sm:$0xff]
  %v113 = vld [vmem:[%s0 + $0x250] sm:$0xff]
  %v114 = vld [vmem:[%s0 + $0x258] sm:$0xff]
  %v115 = vld [vmem:[%s0 + $0x260] sm:$0x3]
  %v116 = vld [vmem:[%s0 + $0x268] sm:$0x3]
  %v117 = vld [vmem:[%s0 + $0x270] sm:$0x3]
  %v118 = vld [vmem:[%s0 + $0x278] sm:$0x3]
  %v119 = vld [vmem:[%s0 + $0x280] sm:$0xff]
  %v120 = vld [vmem:[%s0 + $0x288] sm:$0xff]
  %v121 = vld [vmem:[%s0 + $0x290] sm:$0xff]
  %v122 = vld [vmem:[%s0 + $0x298] sm:$0xff]
  %v123 = vld [vmem:[%s0 + $0x2a0] sm:$0x3]
  %v124 = vld [vmem:[%s0 + $0x2a8] sm:$0x3]
  %v125 = vld [vmem:[%s0 + $0x2b0] sm:$0x3]
  %v126 = vld [vmem:[%s0 + $0x2b8] sm:$0x3]
  %v127 = vld [vmem:[%s0 + $0x2c0] sm:$0xff]
  %v128 = vld [vmem:[%s0 + $0x2c8] sm:$0xff]
  %v129 = vld [vmem:[%s0 + $0x2d0] sm:$0xff]
  %v130 = vld [vmem:[%s0 + $0x2d8] sm:$0xff]
  %v131 = vld [vmem:[%s0 + $0x2e0] sm:$0x3]
  %v132 = vld [vmem:[%s0 + $0x2e8] sm:$0x3]
  %v133 = vld [vmem:[%s0 + $0x2f0] sm:$0x3]
  %v134 = vld [vmem:[%s0 + $0x2f8] sm:$0x3]
  %v135 = vld [vmem:[%s0 + $0x300] sm:$0xff]
  %v136 = vld [vmem:[%s0 + $0x308] sm:$0xff]
  %v137 = vld [vmem:[%s0 + $0x310] sm:$0xff]
  %v138 = vld [vmem:[%s0 + $0x318] sm:$0xff]
  %v139 = vld [vmem:[%s0 + $0x320] sm:$0x3]
  %v140 = vld [vmem:[%s0 + $0x328] sm:$0x3]
  %v141 = vld [vmem:[%s0 + $0x330] sm:$0x3]
  %v142 = vld [vmem:[%s0 + $0x338] sm:$0x3]
  %v143 = vld [vmem:[%s0 + $0x340] sm:$0xff]
  %v144 = vld [vmem:[%s0 + $0x348] sm:$0xff]
  %v145 = vld [vmem:[%s0 + $0x350] sm:$0xff]
  %v146 = vld [vmem:[%s0 + $0x358] sm:$0xff]
  %v147 = vld [vmem:[%s0 + $0x360] sm:$0x3]
  %v148 = vld [vmem:[%s0 + $0x368] sm:$0x3]
  %v149 = vld [vmem:[%s0 + $0x370] sm:$0x3]
  %v150 = vld [vmem:[%s0 + $0x378] sm:$0x3]
  %v151 = vld [vmem:[%s0 + $0x380] sm:$0xff]
  %v152 = vld [vmem:[%s0 + $0x388] sm:$0xff]
  %v153 = vld [vmem:[%s0 + $0x390] sm:$0xff]
  %v154 = vld [vmem:[%s0 + $0x398] sm:$0xff]
  %v155 = vld [vmem:[%s0 + $0x3a0] sm:$0x3]
  %v156 = vld [vmem:[%s0 + $0x3a8] sm:$0x3]
  %v157 = vld [vmem:[%s0 + $0x3b0] sm:$0x3]
  %v158 = vld [vmem:[%s0 + $0x3b8] sm:$0x3]
  %v159 = vld [vmem:[%s0 + $0x3c0] sm:$0xff]
  %v160 = vld [vmem:[%s0 + $0x3c8] sm:$0xff]
  %v161 = vld [vmem:[%s0 + $0x3d0] sm:$0xff]
  %v162 = vld [vmem:[%s0 + $0x3d8] sm:$0xff]
  %v163 = vld [vmem:[%s0 + $0x3e0] sm:$0x3]
  %v164 = vld [vmem:[%s0 + $0x3e8] sm:$0x3]
  %v165 = vld [vmem:[%s0 + $0x3f0] sm:$0x3]
  %v166 = vld [vmem:[%s0 + $0x3f8] sm:$0x3]
  %v167 = vld [vmem:[%s0 + $0x400] sm:$0xff]
  %v168 = vld [vmem:[%s0 + $0x408] sm:$0xff]
  %v169 = vld [vmem:[%s0 + $0x410] sm:$0xff]
  %v170 = vld [vmem:[%s0 + $0x418] sm:$0xff]
  %v171 = vld [vmem:[%s0 + $0x420] sm:$0x3]
  %v172 = vld [vmem:[%s0 + $0x428] sm:$0x3]
  %v173 = vld [vmem:[%s0 + $0x430] sm:$0x3]
  %v174 = vld [vmem:[%s0 + $0x438] sm:$0x3]
  %v175 = vld [vmem:[%s0 + $0x440] sm:$0xff]
  %v176 = vld [vmem:[%s0 + $0x448] sm:$0xff]
  %v177 = vld [vmem:[%s0 + $0x450] sm:$0xff]
  %v178 = vld [vmem:[%s0 + $0x458] sm:$0xff]
  %v179 = vld [vmem:[%s0 + $0x460] sm:$0x3]
  %v180 = vld [vmem:[%s0 + $0x468] sm:$0x3]
  %v181 = vld [vmem:[%s0 + $0x470] sm:$0x3]
  %v182 = vld [vmem:[%s0 + $0x478] sm:$0x3]
  %v183 = vld [vmem:[%s0 + $0x480] sm:$0xff]
  %v184 = vld [vmem:[%s0 + $0x488] sm:$0xff]
  %v185 = vld [vmem:[%s0 + $0x490] sm:$0xff]
  %v186 = vld [vmem:[%s0 + $0x498] sm:$0xff]
  %v187 = vld [vmem:[%s0 + $0x4a0] sm:$0x3]
  %v188 = vld [vmem:[%s0 + $0x4a8] sm:$0x3]
  %v189 = vld [vmem:[%s0 + $0x4b0] sm:$0x3]
  %v190 = vld [vmem:[%s0 + $0x4b8] sm:$0x3]
  %v191 = vld [vmem:[%s0 + $0x4c0] sm:$0xff]
  %v192 = vld [vmem:[%s0 + $0x4c8] sm:$0xff]
  %v193 = vld [vmem:[%s0 + $0x4d0] sm:$0xff]
  %v194 = vld [vmem:[%s0 + $0x4d8] sm:$0xff]
  %v195 = vld [vmem:[%s0 + $0x4e0] sm:$0x3]
  %v196 = vld [vmem:[%s0 + $0x4e8] sm:$0x3]
  %v197 = vld [vmem:[%s0 + $0x4f0] sm:$0x3]
  %v198 = vld [vmem:[%s0 + $0x4f8] sm:$0x3]
  %v199 = vld [vmem:[%s0 + $0x500] sm:$0xff]
  %v200 = vld [vmem:[%s0 + $0x508] sm:$0xff]
  %v201 = vld [vmem:[%s0 + $0x510] sm:$0xff]
  %v202 = vld [vmem:[%s0 + $0x518] sm:$0xff]
  %v203 = vld [vmem:[%s0 + $0x520] sm:$0x3]
  %v204 = vld [vmem:[%s0 + $0x528] sm:$0x3]
  %v205 = vld [vmem:[%s0 + $0x530] sm:$0x3]
  %v206 = vld [vmem:[%s0 + $0x538] sm:$0x3]
  %v207 = vld [vmem:[%s0 + $0x540] sm:$0xff]
  %v208 = vld [vmem:[%s0 + $0x548] sm:$0xff]
  %v209 = vld [vmem:[%s0 + $0x550] sm:$0xff]
  %v210 = vld [vmem:[%s0 + $0x558] sm:$0xff]
  %v211 = vld [vmem:[%s0 + $0x560] sm:$0x3]
  %v212 = vld [vmem:[%s0 + $0x568] sm:$0x3]
  %v213 = vld [vmem:[%s0 + $0x570] sm:$0x3]
  %v214 = vld [vmem:[%s0 + $0x578] sm:$0x3]
  %v215 = vld [vmem:[%s0 + $0x580] sm:$0xff]
  %v216 = vld [vmem:[%s0 + $0x588] sm:$0xff]
  %v217 = vld [vmem:[%s0 + $0x590] sm:$0xff]
  %v218 = vld [vmem:[%s0 + $0x598] sm:$0xff]
  %v219 = vld [vmem:[%s0 + $0x5a0] sm:$0x3]
  %v220 = vld [vmem:[%s0 + $0x5a8] sm:$0x3]
  %v221 = vld [vmem:[%s0 + $0x5b0] sm:$0x3]
  %v222 = vld [vmem:[%s0 + $0x5b8] sm:$0x3]
  %v223 = vld [vmem:[%s0 + $0x5c0] sm:$0xff]
  %v224 = vld [vmem:[%s0 + $0x5c8] sm:$0xff]
  %v225 = vld [vmem:[%s0 + $0x5d0] sm:$0xff]
  %v226 = vld [vmem:[%s0 + $0x5d8] sm:$0xff]
  %v227 = vld [vmem:[%s0 + $0x5e0] sm:$0x3]
  %v228 = vld [vmem:[%s0 + $0x5e8] sm:$0x3]
  %v229 = vld [vmem:[%s0 + $0x5f0] sm:$0x3]
  %v230 = vld [vmem:[%s0 + $0x5f8] sm:$0x3]
  %v231 = vld [vmem:[%s0 + $0x600] sm:$0xff]
  %v232 = vld [vmem:[%s0 + $0x608] sm:$0xff]
  %v233 = vld [vmem:[%s0 + $0x610] sm:$0xff]
  %v234 = vld [vmem:[%s0 + $0x618] sm:$0xff]
  %v235 = vld [vmem:[%s0 + $0x620] sm:$0x3]
  %v236 = vld [vmem:[%s0 + $0x628] sm:$0x3]
  %v237 = vld [vmem:[%s0 + $0x630] sm:$0x3]
  %v238 = vld [vmem:[%s0 + $0x638] sm:$0x3]
  %v239 = vld [vmem:[%s0 + $0x640] sm:$0xff]
  %v240 = vld [vmem:[%s0 + $0x648] sm:$0xff]
  %v241 = vld [vmem:[%s0 + $0x650] sm:$0xff]
  %v242 = vld [vmem:[%s0 + $0x658] sm:$0xff]
  %v243 = vld [vmem:[%s0 + $0x660] sm:$0x3]
  %v244 = vld [vmem:[%s0 + $0x668] sm:$0x3]
  %v245 = vld [vmem:[%s0 + $0x670] sm:$0x3]
  %v246 = vld [vmem:[%s0 + $0x678] sm:$0x3]
  %v247 = vld [vmem:[%s0 + $0x680] sm:$0xff]
  %v248 = vld [vmem:[%s0 + $0x688] sm:$0xff]
  %v249 = vld [vmem:[%s0 + $0x690] sm:$0xff]
  %v250 = vld [vmem:[%s0 + $0x698] sm:$0xff]
  %v251 = vld [vmem:[%s0 + $0x6a0] sm:$0x3]
  %v252 = vld [vmem:[%s0 + $0x6a8] sm:$0x3]
  %v253 = vld [vmem:[%s0 + $0x6b0] sm:$0x3]
  %v254 = vld [vmem:[%s0 + $0x6b8] sm:$0x3]
  %v255 = vld [vmem:[%s0 + $0x6c0] sm:$0xff]
  %v256 = vld [vmem:[%s0 + $0x6c8] sm:$0xff]
  %v257 = vld [vmem:[%s0 + $0x6d0] sm:$0xff]
  %v258 = vld [vmem:[%s0 + $0x6d8] sm:$0xff]
  %v259 = vld [vmem:[%s0 + $0x6e0] sm:$0x3]
  %v260 = vld [vmem:[%s0 + $0x6e8] sm:$0x3]
  %v261 = vld [vmem:[%s0 + $0x6f0] sm:$0x3]
  %v262 = vld [vmem:[%s0 + $0x6f8] sm:$0x3]
  %v263 = vld [vmem:[%s0 + $0x700] sm:$0xff]
  %v264 = vld [vmem:[%s0 + $0x708] sm:$0xff]
  %v265 = vld [vmem:[%s0 + $0x710] sm:$0xff]
  %v266 = vld [vmem:[%s0 + $0x718] sm:$0xff]
  %v267 = vld [vmem:[%s0 + $0x720] sm:$0x3]
  %v268 = vld [vmem:[%s0 + $0x728] sm:$0x3]
  %v269 = vld [vmem:[%s0 + $0x730] sm:$0x3]
  %v270 = vld [vmem:[%s0 + $0x738] sm:$0x3]
  %v271 = vld [vmem:[%s0 + $0x740] sm:$0xff]
  %v272 = vld [vmem:[%s0 + $0x748] sm:$0xff]
  %v273 = vld [vmem:[%s0 + $0x750] sm:$0xff]
  %v274 = vld [vmem:[%s0 + $0x758] sm:$0xff]
  %v275 = vld [vmem:[%s0 + $0x760] sm:$0x3]
  %v276 = vld [vmem:[%s0 + $0x768] sm:$0x3]
  %v277 = vld [vmem:[%s0 + $0x770] sm:$0x3]
  %v278 = vld [vmem:[%s0 + $0x778] sm:$0x3]
  %v279 = vld [vmem:[%s0 + $0x780] sm:$0xff]
  %v280 = vld [vmem:[%s0 + $0x788] sm:$0xff]
  %v281 = vld [vmem:[%s0 + $0x790] sm:$0xff]
  %v282 = vld [vmem:[%s0 + $0x798] sm:$0xff]
  %v283 = vld [vmem:[%s0 + $0x7a0] sm:$0x3]
  %v284 = vld [vmem:[%s0 + $0x7a8] sm:$0x3]
  %v285 = vld [vmem:[%s0 + $0x7b0] sm:$0x3]
  %v286 = vld [vmem:[%s0 + $0x7b8] sm:$0x3]
  %v287 = vld [vmem:[%s0 + $0x7c0] sm:$0xff]
  %v288 = vld [vmem:[%s0 + $0x7c8] sm:$0xff]
  %v289 = vld [vmem:[%s0 + $0x7d0] sm:$0xff]
  %v290 = vld [vmem:[%s0 + $0x7d8] sm:$0xff]
  %v291 = vld [vmem:[%s0 + $0x7e0] sm:$0x3]
  %v292 = vld [vmem:[%s0 + $0x7e8] sm:$0x3]
  %v293 = vld [vmem:[%s0 + $0x7f0] sm:$0x3]
  %v294 = vld [vmem:[%s0 + $0x7f8] sm:$0x3]
  %v295 = vand.u32 2147483647, %v39
  %v296 = vand.u32 2147483647, %v40
  %v297 = vand.u32 2147483647, %v41
  %v298 = vand.u32 2147483647, %v42
  %v299 = vand.u32 2147483647, %v43
  %v300 = vand.u32 2147483647, %v44
  %v301 = vand.u32 2147483647, %v45
  %v302 = vand.u32 2147483647, %v46
  %v303 = vand.u32 2147483647, %v47
  %v304 = vand.u32 2147483647, %v48
  %v305 = vand.u32 2147483647, %v49
  %v306 = vand.u32 2147483647, %v50
  %v307 = vand.u32 2147483647, %v51
  %v308 = vand.u32 2147483647, %v52
  %v309 = vand.u32 2147483647, %v53
  %v310 = vand.u32 2147483647, %v54
  %v311 = vand.u32 2147483647, %v55
  %v312 = vand.u32 2147483647, %v56
  %v313 = vand.u32 2147483647, %v57
  %v314 = vand.u32 2147483647, %v58
  %v315 = vand.u32 2147483647, %v59
  %v316 = vand.u32 2147483647, %v60
  %v317 = vand.u32 2147483647, %v61
  %v318 = vand.u32 2147483647, %v62
  %v319 = vand.u32 2147483647, %v63
  %v320 = vand.u32 2147483647, %v64
  %v321 = vand.u32 2147483647, %v65
  %v322 = vand.u32 2147483647, %v66
  %v323 = vand.u32 2147483647, %v67
  %v324 = vand.u32 2147483647, %v68
  %v325 = vand.u32 2147483647, %v69
  %v326 = vand.u32 2147483647, %v70
  %v327 = vand.u32 2147483647, %v71
  %v328 = vand.u32 2147483647, %v72
  %v329 = vand.u32 2147483647, %v73
  %v330 = vand.u32 2147483647, %v74
  %v331 = vand.u32 2147483647, %v75
  %v332 = vand.u32 2147483647, %v76
  %v333 = vand.u32 2147483647, %v77
  %v334 = vand.u32 2147483647, %v78
  %v335 = vand.u32 2147483647, %v79
  %v336 = vand.u32 2147483647, %v80
  %v337 = vand.u32 2147483647, %v81
  %v338 = vand.u32 2147483647, %v82
  %v339 = vand.u32 2147483647, %v83
  %v340 = vand.u32 2147483647, %v84
  %v341 = vand.u32 2147483647, %v85
  %v342 = vand.u32 2147483647, %v86
  %v343 = vand.u32 2147483647, %v87
  %v344 = vand.u32 2147483647, %v88
  %v345 = vand.u32 2147483647, %v89
  %v346 = vand.u32 2147483647, %v90
  %v347 = vand.u32 2147483647, %v91
  %v348 = vand.u32 2147483647, %v92
  %v349 = vand.u32 2147483647, %v93
  %v350 = vand.u32 2147483647, %v94
  %v351 = vand.u32 2147483647, %v95
  %v352 = vand.u32 2147483647, %v96
  %v353 = vand.u32 2147483647, %v97
  %v354 = vand.u32 2147483647, %v98
  %v355 = vand.u32 2147483647, %v99
  %v356 = vand.u32 2147483647, %v100
  %v357 = vand.u32 2147483647, %v101
  %v358 = vand.u32 2147483647, %v102
  %v359 = vand.u32 2147483647, %v103
  %v360 = vand.u32 2147483647, %v104
  %v361 = vand.u32 2147483647, %v105
  %v362 = vand.u32 2147483647, %v106
  %v363 = vand.u32 2147483647, %v107
  %v364 = vand.u32 2147483647, %v108
  %v365 = vand.u32 2147483647, %v109
  %v366 = vand.u32 2147483647, %v110
  %v367 = vand.u32 2147483647, %v111
  %v368 = vand.u32 2147483647, %v112
  %v369 = vand.u32 2147483647, %v113
  %v370 = vand.u32 2147483647, %v114
  %v371 = vand.u32 2147483647, %v115
  %v372 = vand.u32 2147483647, %v116
  %v373 = vand.u32 2147483647, %v117
  %v374 = vand.u32 2147483647, %v118
  %v375 = vand.u32 2147483647, %v119
  %v376 = vand.u32 2147483647, %v120
  %v377 = vand.u32 2147483647, %v121
  %v378 = vand.u32 2147483647, %v122
  %v379 = vand.u32 2147483647, %v123
  %v380 = vand.u32 2147483647, %v124
  %v381 = vand.u32 2147483647, %v125
  %v382 = vand.u32 2147483647, %v126
  %v383 = vand.u32 2147483647, %v127
  %v384 = vand.u32 2147483647, %v128
  %v385 = vand.u32 2147483647, %v129
  %v386 = vand.u32 2147483647, %v130
  %v387 = vand.u32 2147483647, %v131
  %v388 = vand.u32 2147483647, %v132
  %v389 = vand.u32 2147483647, %v133
  %v390 = vand.u32 2147483647, %v134
  %v391 = vand.u32 2147483647, %v135
  %v392 = vand.u32 2147483647, %v136
  %v393 = vand.u32 2147483647, %v137
  %v394 = vand.u32 2147483647, %v138
  %v395 = vand.u32 2147483647, %v139
  %v396 = vand.u32 2147483647, %v140
  %v397 = vand.u32 2147483647, %v141
  %v398 = vand.u32 2147483647, %v142
  %v399 = vand.u32 2147483647, %v143
  %v400 = vand.u32 2147483647, %v144
  %v401 = vand.u32 2147483647, %v145
  %v402 = vand.u32 2147483647, %v146
  %v403 = vand.u32 2147483647, %v147
  %v404 = vand.u32 2147483647, %v148
  %v405 = vand.u32 2147483647, %v149
  %v406 = vand.u32 2147483647, %v150
  %v407 = vand.u32 2147483647, %v151
  %v408 = vand.u32 2147483647, %v152
  %v409 = vand.u32 2147483647, %v153
  %v410 = vand.u32 2147483647, %v154
  %v411 = vand.u32 2147483647, %v155
  %v412 = vand.u32 2147483647, %v156
  %v413 = vand.u32 2147483647, %v157
  %v414 = vand.u32 2147483647, %v158
  %v415 = vand.u32 2147483647, %v159
  %v416 = vand.u32 2147483647, %v160
  %v417 = vand.u32 2147483647, %v161
  %v418 = vand.u32 2147483647, %v162
  %v419 = vand.u32 2147483647, %v163
  %v420 = vand.u32 2147483647, %v164
  %v421 = vand.u32 2147483647, %v165
  %v422 = vand.u32 2147483647, %v166
  %v423 = vand.u32 2147483647, %v167
  %v424 = vand.u32 2147483647, %v168
  %v425 = vand.u32 2147483647, %v169
  %v426 = vand.u32 2147483647, %v170
  %v427 = vand.u32 2147483647, %v171
  %v428 = vand.u32 2147483647, %v172
  %v429 = vand.u32 2147483647, %v173
  %v430 = vand.u32 2147483647, %v174
  %v431 = vand.u32 2147483647, %v175
  %v432 = vand.u32 2147483647, %v176
  %v433 = vand.u32 2147483647, %v177
  %v434 = vand.u32 2147483647, %v178
  %v435 = vand.u32 2147483647, %v179
  %v436 = vand.u32 2147483647, %v180
  %v437 = vand.u32 2147483647, %v181
  %v438 = vand.u32 2147483647, %v182
  %v439 = vand.u32 2147483647, %v183
  %v440 = vand.u32 2147483647, %v184
  %v441 = vand.u32 2147483647, %v185
  %v442 = vand.u32 2147483647, %v186
  %v443 = vand.u32 2147483647, %v187
  %v444 = vand.u32 2147483647, %v188
  %v445 = vand.u32 2147483647, %v189
  %v446 = vand.u32 2147483647, %v190
  %v447 = vand.u32 2147483647, %v191
  %v448 = vand.u32 2147483647, %v192
  %v449 = vand.u32 2147483647, %v193
  %v450 = vand.u32 2147483647, %v194
  %v451 = vand.u32 2147483647, %v195
  %v452 = vand.u32 2147483647, %v196
  %v453 = vand.u32 2147483647, %v197
  %v454 = vand.u32 2147483647, %v198
  %v455 = vand.u32 2147483647, %v199
  %v456 = vand.u32 2147483647, %v200
  %v457 = vand.u32 2147483647, %v201
  %v458 = vand.u32 2147483647, %v202
  %v459 = vand.u32 2147483647, %v203
  %v460 = vand.u32 2147483647, %v204
  %v461 = vand.u32 2147483647, %v205
  %v462 = vand.u32 2147483647, %v206
  %v463 = vand.u32 2147483647, %v207
  %v464 = vand.u32 2147483647, %v208
  %v465 = vand.u32 2147483647, %v209
  %v466 = vand.u32 2147483647, %v210
  %v467 = vand.u32 2147483647, %v211
  %v468 = vand.u32 2147483647, %v212
  %v469 = vand.u32 2147483647, %v213
  %v470 = vand.u32 2147483647, %v214
  %v471 = vand.u32 2147483647, %v215
  %v472 = vand.u32 2147483647, %v216
  %v473 = vand.u32 2147483647, %v217
  %v474 = vand.u32 2147483647, %v218
  %v475 = vand.u32 2147483647, %v219
  %v476 = vand.u32 2147483647, %v220
  %v477 = vand.u32 2147483647, %v221
  %v478 = vand.u32 2147483647, %v222
  %v479 = vand.u32 2147483647, %v223
  %v480 = vand.u32 2147483647, %v224
  %v481 = vand.u32 2147483647, %v225
  %v482 = vand.u32 2147483647, %v226
  %v483 = vand.u32 2147483647, %v227
  %v484 = vand.u32 2147483647, %v228
  %v485 = vand.u32 2147483647, %v229
  %v486 = vand.u32 2147483647, %v230
  %v487 = vand.u32 2147483647, %v231
  %v488 = vand.u32 2147483647, %v232
  %v489 = vand.u32 2147483647, %v233
  %v490 = vand.u32 2147483647, %v234
  %v491 = vand.u32 2147483647, %v235
  %v492 = vand.u32 2147483647, %v236
  %v493 = vand.u32 2147483647, %v237
  %v494 = vand.u32 2147483647, %v238
  %v495 = vand.u32 2147483647, %v239
  %v496 = vand.u32 2147483647, %v240
  %v497 = vand.u32 2147483647, %v241
  %v498 = vand.u32 2147483647, %v242
  %v499 = vand.u32 2147483647, %v243
  %v500 = vand.u32 2147483647, %v244
  %v501 = vand.u32 2147483647, %v245
  %v502 = vand.u32 2147483647, %v246
  %v503 = vand.u32 2147483647, %v247
  %v504 = vand.u32 2147483647, %v248
  %v505 = vand.u32 2147483647, %v249
  %v506 = vand.u32 2147483647, %v250
  %v507 = vand.u32 2147483647, %v251
  %v508 = vand.u32 2147483647, %v252
  %v509 = vand.u32 2147483647, %v253
  %v510 = vand.u32 2147483647, %v254
  %v511 = vand.u32 2147483647, %v255
  %v512 = vand.u32 2147483647, %v256
  %v513 = vand.u32 2147483647, %v257
  %v514 = vand.u32 2147483647, %v258
  %v515 = vand.u32 2147483647, %v259
  %v516 = vand.u32 2147483647, %v260
  %v517 = vand.u32 2147483647, %v261
  %v518 = vand.u32 2147483647, %v262
  %v519 = vand.u32 2147483647, %v263
  %v520 = vand.u32 2147483647, %v264
  %v521 = vand.u32 2147483647, %v265
  %v522 = vand.u32 2147483647, %v266
  %v523 = vand.u32 2147483647, %v267
  %v524 = vand.u32 2147483647, %v268
  %v525 = vand.u32 2147483647, %v269
  %v526 = vand.u32 2147483647, %v270
  %v527 = vand.u32 2147483647, %v271
  %v528 = vand.u32 2147483647, %v272
  %v529 = vand.u32 2147483647, %v273
  %v530 = vand.u32 2147483647, %v274
  %v531 = vand.u32 2147483647, %v275
  %v532 = vand.u32 2147483647, %v276
  %v533 = vand.u32 2147483647, %v277
  %v534 = vand.u32 2147483647, %v278
  %v535 = vand.u32 2147483647, %v279
  %v536 = vand.u32 2147483647, %v280
  %v537 = vand.u32 2147483647, %v281
  %v538 = vand.u32 2147483647, %v282
  %v539 = vand.u32 2147483647, %v283
  %v540 = vand.u32 2147483647, %v284
  %v541 = vand.u32 2147483647, %v285
  %v542 = vand.u32 2147483647, %v286
  %v543 = vand.u32 2147483647, %v287
  %v544 = vand.u32 2147483647, %v288
  %v545 = vand.u32 2147483647, %v289
  %v546 = vand.u32 2147483647, %v290
  %v547 = vand.u32 2147483647, %v291
  %v548 = vand.u32 2147483647, %v292
  %v549 = vand.u32 2147483647, %v293
  %v550 = vand.u32 2147483647, %v294
  %v551 = vmax.f32 %v295, %v296
  %v552 = vmax.f32 %v551, %v297
  %vm553 = vcmask 465920
  %v554 = vsel %vm553, %v298, -inf
  %v555 = vmax.f32 %v552, %v554
  %556 = vmax.xlane.f32.xlu0 %v555
  %v557 = vpop.xlane.xlu0 %556
  %vm558 = vcmask 1041408
  %v559 = vsel %vm558, %v299, -inf
  %v560 = vsel %vm558, %v300, -inf
  %v561 = vmax.f32 %v559, %v560
  %v562 = vsel %vm558, %v301, -inf
  %v563 = vmax.f32 %v561, %v562
  %vm564 = vcmask 459776
  %v565 = vsel %vm564, %v302, -inf
  %v566 = vmax.f32 %v563, %v565
  %567 = vmax.xlane.f32.xlu0 %v566
  %v568 = vpop.xlane.xlu0 %567
  %v569 = vmax.f32 %v303, %v304
  %v570 = vmax.f32 %v569, %v305
  %v571 = vsel %vm553, %v306, -inf
  %v572 = vmax.f32 %v570, %v571
  %573 = vmax.xlane.f32.xlu0 %v572
  %v574 = vpop.xlane.xlu0 %573
  %v575 = vsel %vm558, %v307, -inf
  %v576 = vsel %vm558, %v308, -inf
  %v577 = vmax.f32 %v575, %v576
  %v578 = vsel %vm558, %v309, -inf
  %v579 = vmax.f32 %v577, %v578
  %v580 = vsel %vm564, %v310, -inf
  %v581 = vmax.f32 %v579, %v580
  %582 = vmax.xlane.f32.xlu0 %v581
  %v583 = vpop.xlane.xlu0 %582
  %v584 = vmax.f32 %v311, %v312
  %v585 = vmax.f32 %v584, %v313
  %v586 = vsel %vm553, %v314, -inf
  %v587 = vmax.f32 %v585, %v586
  %588 = vmax.xlane.f32.xlu0 %v587
  %v589 = vpop.xlane.xlu0 %588
  %v590 = vsel %vm558, %v315, -inf
  %v591 = vsel %vm558, %v316, -inf
  %v592 = vmax.f32 %v590, %v591
  %v593 = vsel %vm558, %v317, -inf
  %v594 = vmax.f32 %v592, %v593
  %v595 = vsel %vm564, %v318, -inf
  %v596 = vmax.f32 %v594, %v595
  %597 = vmax.xlane.f32.xlu0 %v596
  %v598 = vpop.xlane.xlu0 %597
  %v599 = vmax.f32 %v319, %v320
  %v600 = vmax.f32 %v599, %v321
  %v601 = vsel %vm553, %v322, -inf
  %v602 = vmax.f32 %v600, %v601
  %603 = vmax.xlane.f32.xlu0 %v602
  %v604 = vpop.xlane.xlu0 %603
  %v605 = vsel %vm558, %v323, -inf
  %v606 = vsel %vm558, %v324, -inf
  %v607 = vmax.f32 %v605, %v606
  %v608 = vsel %vm558, %v325, -inf
  %v609 = vmax.f32 %v607, %v608
  %v610 = vsel %vm564, %v326, -inf
  %v611 = vmax.f32 %v609, %v610
  %612 = vmax.xlane.f32.xlu0 %v611
  %v613 = vpop.xlane.xlu0 %612
  %v614 = vmax.f32 %v327, %v328
  %v615 = vmax.f32 %v614, %v329
  %v616 = vsel %vm553, %v330, -inf
  %v617 = vmax.f32 %v615, %v616
  %618 = vmax.xlane.f32.xlu0 %v617
  %v619 = vpop.xlane.xlu0 %618
  %v620 = vsel %vm558, %v331, -inf
  %v621 = vsel %vm558, %v332, -inf
  %v622 = vmax.f32 %v620, %v621
  %v623 = vsel %vm558, %v333, -inf
  %v624 = vmax.f32 %v622, %v623
  %v625 = vsel %vm564, %v334, -inf
  %v626 = vmax.f32 %v624, %v625
  %627 = vmax.xlane.f32.xlu0 %v626
  %v628 = vpop.xlane.xlu0 %627
  %v629 = vmax.f32 %v335, %v336
  %v630 = vmax.f32 %v629, %v337
  %v631 = vsel %vm553, %v338, -inf
  %v632 = vmax.f32 %v630, %v631
  %633 = vmax.xlane.f32.xlu0 %v632
  %v634 = vpop.xlane.xlu0 %633
  %v635 = vsel %vm558, %v339, -inf
  %v636 = vsel %vm558, %v340, -inf
  %v637 = vmax.f32 %v635, %v636
  %v638 = vsel %vm558, %v341, -inf
  %v639 = vmax.f32 %v637, %v638
  %v640 = vsel %vm564, %v342, -inf
  %v641 = vmax.f32 %v639, %v640
  %642 = vmax.xlane.f32.xlu0 %v641
  %v643 = vpop.xlane.xlu0 %642
  %v644 = vmax.f32 %v343, %v344
  %v645 = vmax.f32 %v644, %v345
  %v646 = vsel %vm553, %v346, -inf
  %v647 = vmax.f32 %v645, %v646
  %648 = vmax.xlane.f32.xlu0 %v647
  %v649 = vpop.xlane.xlu0 %648
  %v650 = vsel %vm558, %v347, -inf
  %v651 = vsel %vm558, %v348, -inf
  %v652 = vmax.f32 %v650, %v651
  %v653 = vsel %vm558, %v349, -inf
  %v654 = vmax.f32 %v652, %v653
  %v655 = vsel %vm564, %v350, -inf
  %v656 = vmax.f32 %v654, %v655
  %657 = vmax.xlane.f32.xlu0 %v656
  %v658 = vpop.xlane.xlu0 %657
  %v659 = vmax.f32 %v351, %v352
  %v660 = vmax.f32 %v659, %v353
  %v661 = vsel %vm553, %v354, -inf
  %v662 = vmax.f32 %v660, %v661
  %663 = vmax.xlane.f32.xlu0 %v662
  %v664 = vpop.xlane.xlu0 %663
  %v665 = vsel %vm558, %v355, -inf
  %v666 = vsel %vm558, %v356, -inf
  %v667 = vmax.f32 %v665, %v666
  %v668 = vsel %vm558, %v357, -inf
  %v669 = vmax.f32 %v667, %v668
  %v670 = vsel %vm564, %v358, -inf
  %v671 = vmax.f32 %v669, %v670
  %672 = vmax.xlane.f32.xlu0 %v671
  %v673 = vpop.xlane.xlu0 %672
  %v674 = vmax.f32 %v359, %v360
  %v675 = vmax.f32 %v674, %v361
  %v676 = vsel %vm553, %v362, -inf
  %v677 = vmax.f32 %v675, %v676
  %678 = vmax.xlane.f32.xlu0 %v677
  %v679 = vpop.xlane.xlu0 %678
  %v680 = vsel %vm558, %v363, -inf
  %v681 = vsel %vm558, %v364, -inf
  %v682 = vmax.f32 %v680, %v681
  %v683 = vsel %vm558, %v365, -inf
  %v684 = vmax.f32 %v682, %v683
  %v685 = vsel %vm564, %v366, -inf
  %v686 = vmax.f32 %v684, %v685
  %687 = vmax.xlane.f32.xlu0 %v686
  %v688 = vpop.xlane.xlu0 %687
  %v689 = vmax.f32 %v367, %v368
  %v690 = vmax.f32 %v689, %v369
  %v691 = vsel %vm553, %v370, -inf
  %v692 = vmax.f32 %v690, %v691
  %693 = vmax.xlane.f32.xlu0 %v692
  %v694 = vpop.xlane.xlu0 %693
  %v695 = vsel %vm558, %v371, -inf
  %v696 = vsel %vm558, %v372, -inf
  %v697 = vmax.f32 %v695, %v696
  %v698 = vsel %vm558, %v373, -inf
  %v699 = vmax.f32 %v697, %v698
  %v700 = vsel %vm564, %v374, -inf
  %v701 = vmax.f32 %v699, %v700
  %702 = vmax.xlane.f32.xlu0 %v701
  %v703 = vpop.xlane.xlu0 %702
  %v704 = vmax.f32 %v375, %v376
  %v705 = vmax.f32 %v704, %v377
  %v706 = vsel %vm553, %v378, -inf
  %v707 = vmax.f32 %v705, %v706
  %708 = vmax.xlane.f32.xlu0 %v707
  %v709 = vpop.xlane.xlu0 %708
  %v710 = vsel %vm558, %v379, -inf
  %v711 = vsel %vm558, %v380, -inf
  %v712 = vmax.f32 %v710, %v711
  %v713 = vsel %vm558, %v381, -inf
  %v714 = vmax.f32 %v712, %v713
  %v715 = vsel %vm564, %v382, -inf
  %v716 = vmax.f32 %v714, %v715
  %717 = vmax.xlane.f32.xlu0 %v716
  %v718 = vpop.xlane.xlu0 %717
  %v719 = vmax.f32 %v383, %v384
  %v720 = vmax.f32 %v719, %v385
  %v721 = vsel %vm553, %v386, -inf
  %v722 = vmax.f32 %v720, %v721
  %723 = vmax.xlane.f32.xlu0 %v722
  %v724 = vpop.xlane.xlu0 %723
  %v725 = vsel %vm558, %v387, -inf
  %v726 = vsel %vm558, %v388, -inf
  %v727 = vmax.f32 %v725, %v726
  %v728 = vsel %vm558, %v389, -inf
  %v729 = vmax.f32 %v727, %v728
  %v730 = vsel %vm564, %v390, -inf
  %v731 = vmax.f32 %v729, %v730
  %732 = vmax.xlane.f32.xlu0 %v731
  %v733 = vpop.xlane.xlu0 %732
  %v734 = vmax.f32 %v391, %v392
  %v735 = vmax.f32 %v734, %v393
  %v736 = vsel %vm553, %v394, -inf
  %v737 = vmax.f32 %v735, %v736
  %738 = vmax.xlane.f32.xlu0 %v737
  %v739 = vpop.xlane.xlu0 %738
  %v740 = vsel %vm558, %v395, -inf
  %v741 = vsel %vm558, %v396, -inf
  %v742 = vmax.f32 %v740, %v741
  %v743 = vsel %vm558, %v397, -inf
  %v744 = vmax.f32 %v742, %v743
  %v745 = vsel %vm564, %v398, -inf
  %v746 = vmax.f32 %v744, %v745
  %747 = vmax.xlane.f32.xlu0 %v746
  %v748 = vpop.xlane.xlu0 %747
  %v749 = vmax.f32 %v399, %v400
  %v750 = vmax.f32 %v749, %v401
  %v751 = vsel %vm553, %v402, -inf
  %v752 = vmax.f32 %v750, %v751
  %753 = vmax.xlane.f32.xlu0 %v752
  %v754 = vpop.xlane.xlu0 %753
  %v755 = vsel %vm558, %v403, -inf
  %v756 = vsel %vm558, %v404, -inf
  %v757 = vmax.f32 %v755, %v756
  %v758 = vsel %vm558, %v405, -inf
  %v759 = vmax.f32 %v757, %v758
  %v760 = vsel %vm564, %v406, -inf
  %v761 = vmax.f32 %v759, %v760
  %762 = vmax.xlane.f32.xlu0 %v761
  %v763 = vpop.xlane.xlu0 %762
  %v764 = vmax.f32 %v407, %v408
  %v765 = vmax.f32 %v764, %v409
  %v766 = vsel %vm553, %v410, -inf
  %v767 = vmax.f32 %v765, %v766
  %768 = vmax.xlane.f32.xlu0 %v767
  %v769 = vpop.xlane.xlu0 %768
  %v770 = vsel %vm558, %v411, -inf
  %v771 = vsel %vm558, %v412, -inf
  %v772 = vmax.f32 %v770, %v771
  %v773 = vsel %vm558, %v413, -inf
  %v774 = vmax.f32 %v772, %v773
  %v775 = vsel %vm564, %v414, -inf
  %v776 = vmax.f32 %v774, %v775
  %777 = vmax.xlane.f32.xlu0 %v776
  %v778 = vpop.xlane.xlu0 %777
  %v779 = vmax.f32 %v415, %v416
  %v780 = vmax.f32 %v779, %v417
  %v781 = vsel %vm553, %v418, -inf
  %v782 = vmax.f32 %v780, %v781
  %783 = vmax.xlane.f32.xlu0 %v782
  %v784 = vpop.xlane.xlu0 %783
  %v785 = vsel %vm558, %v419, -inf
  %v786 = vsel %vm558, %v420, -inf
  %v787 = vmax.f32 %v785, %v786
  %v788 = vsel %vm558, %v421, -inf
  %v789 = vmax.f32 %v787, %v788
  %v790 = vsel %vm564, %v422, -inf
  %v791 = vmax.f32 %v789, %v790
  %792 = vmax.xlane.f32.xlu0 %v791
  %v793 = vpop.xlane.xlu0 %792
  %v794 = vmax.f32 %v423, %v424
  %v795 = vmax.f32 %v794, %v425
  %v796 = vsel %vm553, %v426, -inf
  %v797 = vmax.f32 %v795, %v796
  %798 = vmax.xlane.f32.xlu0 %v797
  %v799 = vpop.xlane.xlu0 %798
  %v800 = vsel %vm558, %v427, -inf
  %v801 = vsel %vm558, %v428, -inf
  %v802 = vmax.f32 %v800, %v801
  %v803 = vsel %vm558, %v429, -inf
  %v804 = vmax.f32 %v802, %v803
  %v805 = vsel %vm564, %v430, -inf
  %v806 = vmax.f32 %v804, %v805
  %807 = vmax.xlane.f32.xlu0 %v806
  %v808 = vpop.xlane.xlu0 %807
  %v809 = vmax.f32 %v431, %v432
  %v810 = vmax.f32 %v809, %v433
  %v811 = vsel %vm553, %v434, -inf
  %v812 = vmax.f32 %v810, %v811
  %813 = vmax.xlane.f32.xlu0 %v812
  %v814 = vpop.xlane.xlu0 %813
  %v815 = vsel %vm558, %v435, -inf
  %v816 = vsel %vm558, %v436, -inf
  %v817 = vmax.f32 %v815, %v816
  %v818 = vsel %vm558, %v437, -inf
  %v819 = vmax.f32 %v817, %v818
  %v820 = vsel %vm564, %v438, -inf
  %v821 = vmax.f32 %v819, %v820
  %822 = vmax.xlane.f32.xlu0 %v821
  %v823 = vpop.xlane.xlu0 %822
  %v824 = vmax.f32 %v439, %v440
  %v825 = vmax.f32 %v824, %v441
  %v826 = vsel %vm553, %v442, -inf
  %v827 = vmax.f32 %v825, %v826
  %828 = vmax.xlane.f32.xlu0 %v827
  %v829 = vpop.xlane.xlu0 %828
  %v830 = vsel %vm558, %v443, -inf
  %v831 = vsel %vm558, %v444, -inf
  %v832 = vmax.f32 %v830, %v831
  %v833 = vsel %vm558, %v445, -inf
  %v834 = vmax.f32 %v832, %v833
  %v835 = vsel %vm564, %v446, -inf
  %v836 = vmax.f32 %v834, %v835
  %837 = vmax.xlane.f32.xlu0 %v836
  %v838 = vpop.xlane.xlu0 %837
  %v839 = vmax.f32 %v447, %v448
  %v840 = vmax.f32 %v839, %v449
  %v841 = vsel %vm553, %v450, -inf
  %v842 = vmax.f32 %v840, %v841
  %843 = vmax.xlane.f32.xlu0 %v842
  %v844 = vpop.xlane.xlu0 %843
  %v845 = vsel %vm558, %v451, -inf
  %v846 = vsel %vm558, %v452, -inf
  %v847 = vmax.f32 %v845, %v846
  %v848 = vsel %vm558, %v453, -inf
  %v849 = vmax.f32 %v847, %v848
  %v850 = vsel %vm564, %v454, -inf
  %v851 = vmax.f32 %v849, %v850
  %852 = vmax.xlane.f32.xlu0 %v851
  %v853 = vpop.xlane.xlu0 %852
  %v854 = vmax.f32 %v455, %v456
  %v855 = vmax.f32 %v854, %v457
  %v856 = vsel %vm553, %v458, -inf
  %v857 = vmax.f32 %v855, %v856
  %858 = vmax.xlane.f32.xlu0 %v857
  %v859 = vpop.xlane.xlu0 %858
  %v860 = vsel %vm558, %v459, -inf
  %v861 = vsel %vm558, %v460, -inf
  %v862 = vmax.f32 %v860, %v861
  %v863 = vsel %vm558, %v461, -inf
  %v864 = vmax.f32 %v862, %v863
  %v865 = vsel %vm564, %v462, -inf
  %v866 = vmax.f32 %v864, %v865
  %867 = vmax.xlane.f32.xlu0 %v866
  %v868 = vpop.xlane.xlu0 %867
  %v869 = vmax.f32 %v463, %v464
  %v870 = vmax.f32 %v869, %v465
  %v871 = vsel %vm553, %v466, -inf
  %v872 = vmax.f32 %v870, %v871
  %873 = vmax.xlane.f32.xlu0 %v872
  %v874 = vpop.xlane.xlu0 %873
  %v875 = vsel %vm558, %v467, -inf
  %v876 = vsel %vm558, %v468, -inf
  %v877 = vmax.f32 %v875, %v876
  %v878 = vsel %vm558, %v469, -inf
  %v879 = vmax.f32 %v877, %v878
  %v880 = vsel %vm564, %v470, -inf
  %v881 = vmax.f32 %v879, %v880
  %882 = vmax.xlane.f32.xlu0 %v881
  %v883 = vpop.xlane.xlu0 %882
  %v884 = vmax.f32 %v471, %v472
  %v885 = vmax.f32 %v884, %v473
  %v886 = vsel %vm553, %v474, -inf
  %v887 = vmax.f32 %v885, %v886
  %888 = vmax.xlane.f32.xlu0 %v887
  %v889 = vpop.xlane.xlu0 %888
  %v890 = vsel %vm558, %v475, -inf
  %v891 = vsel %vm558, %v476, -inf
  %v892 = vmax.f32 %v890, %v891
  %v893 = vsel %vm558, %v477, -inf
  %v894 = vmax.f32 %v892, %v893
  %v895 = vsel %vm564, %v478, -inf
  %v896 = vmax.f32 %v894, %v895
  %897 = vmax.xlane.f32.xlu0 %v896
  %v898 = vpop.xlane.xlu0 %897
  %v899 = vmax.f32 %v479, %v480
  %v900 = vmax.f32 %v899, %v481
  %v901 = vsel %vm553, %v482, -inf
  %v902 = vmax.f32 %v900, %v901
  %903 = vmax.xlane.f32.xlu0 %v902
  %v904 = vpop.xlane.xlu0 %903
  %v905 = vsel %vm558, %v483, -inf
  %v906 = vsel %vm558, %v484, -inf
  %v907 = vmax.f32 %v905, %v906
  %v908 = vsel %vm558, %v485, -inf
  %v909 = vmax.f32 %v907, %v908
  %v910 = vsel %vm564, %v486, -inf
  %v911 = vmax.f32 %v909, %v910
  %912 = vmax.xlane.f32.xlu0 %v911
  %v913 = vpop.xlane.xlu0 %912
  %v914 = vmax.f32 %v487, %v488
  %v915 = vmax.f32 %v914, %v489
  %v916 = vsel %vm553, %v490, -inf
  %v917 = vmax.f32 %v915, %v916
  %918 = vmax.xlane.f32.xlu0 %v917
  %v919 = vpop.xlane.xlu0 %918
  %v920 = vsel %vm558, %v491, -inf
  %v921 = vsel %vm558, %v492, -inf
  %v922 = vmax.f32 %v920, %v921
  %v923 = vsel %vm558, %v493, -inf
  %v924 = vmax.f32 %v922, %v923
  %v925 = vsel %vm564, %v494, -inf
  %v926 = vmax.f32 %v924, %v925
  %927 = vmax.xlane.f32.xlu0 %v926
  %v928 = vpop.xlane.xlu0 %927
  %v929 = vmax.f32 %v495, %v496
  %v930 = vmax.f32 %v929, %v497
  %v931 = vsel %vm553, %v498, -inf
  %v932 = vmax.f32 %v930, %v931
  %933 = vmax.xlane.f32.xlu0 %v932
  %v934 = vpop.xlane.xlu0 %933
  %v935 = vsel %vm558, %v499, -inf
  %v936 = vsel %vm558, %v500, -inf
  %v937 = vmax.f32 %v935, %v936
  %v938 = vsel %vm558, %v501, -inf
  %v939 = vmax.f32 %v937, %v938
  %v940 = vsel %vm564, %v502, -inf
  %v941 = vmax.f32 %v939, %v940
  %942 = vmax.xlane.f32.xlu0 %v941
  %v943 = vpop.xlane.xlu0 %942
  %v944 = vmax.f32 %v503, %v504
  %v945 = vmax.f32 %v944, %v505
  %v946 = vsel %vm553, %v506, -inf
  %v947 = vmax.f32 %v945, %v946
  %948 = vmax.xlane.f32.xlu0 %v947
  %v949 = vpop.xlane.xlu0 %948
  %v950 = vsel %vm558, %v507, -inf
  %v951 = vsel %vm558, %v508, -inf
  %v952 = vmax.f32 %v950, %v951
  %v953 = vsel %vm558, %v509, -inf
  %v954 = vmax.f32 %v952, %v953
  %v955 = vsel %vm564, %v510, -inf
  %v956 = vmax.f32 %v954, %v955
  %957 = vmax.xlane.f32.xlu0 %v956
  %v958 = vpop.xlane.xlu0 %957
  %v959 = vmax.f32 %v511, %v512
  %v960 = vmax.f32 %v959, %v513
  %v961 = vsel %vm553, %v514, -inf
  %v962 = vmax.f32 %v960, %v961
  %963 = vmax.xlane.f32.xlu0 %v962
  %v964 = vpop.xlane.xlu0 %963
  %v965 = vsel %vm558, %v515, -inf
  %v966 = vsel %vm558, %v516, -inf
  %v967 = vmax.f32 %v965, %v966
  %v968 = vsel %vm558, %v517, -inf
  %v969 = vmax.f32 %v967, %v968
  %v970 = vsel %vm564, %v518, -inf
  %v971 = vmax.f32 %v969, %v970
  %972 = vmax.xlane.f32.xlu0 %v971
  %v973 = vpop.xlane.xlu0 %972
  %v974 = vmax.f32 %v519, %v520
  %v975 = vmax.f32 %v974, %v521
  %v976 = vsel %vm553, %v522, -inf
  %v977 = vmax.f32 %v975, %v976
  %978 = vmax.xlane.f32.xlu0 %v977
  %v979 = vpop.xlane.xlu0 %978
  %v980 = vsel %vm558, %v523, -inf
  %v981 = vsel %vm558, %v524, -inf
  %v982 = vmax.f32 %v980, %v981
  %v983 = vsel %vm558, %v525, -inf
  %v984 = vmax.f32 %v982, %v983
  %v985 = vsel %vm564, %v526, -inf
  %v986 = vmax.f32 %v984, %v985
  %987 = vmax.xlane.f32.xlu0 %v986
  %v988 = vpop.xlane.xlu0 %987
  %v989 = vmax.f32 %v527, %v528
  %v990 = vmax.f32 %v989, %v529
  %v991 = vsel %vm553, %v530, -inf
  %v992 = vmax.f32 %v990, %v991
  %993 = vmax.xlane.f32.xlu0 %v992
  %v994 = vpop.xlane.xlu0 %993
  %v995 = vsel %vm558, %v531, -inf
  %v996 = vsel %vm558, %v532, -inf
  %v997 = vmax.f32 %v995, %v996
  %v998 = vsel %vm558, %v533, -inf
  %v999 = vmax.f32 %v997, %v998
  %v1000 = vsel %vm564, %v534, -inf
  %v1001 = vmax.f32 %v999, %v1000
  %1002 = vmax.xlane.f32.xlu0 %v1001
  %v1003 = vpop.xlane.xlu0 %1002
  %v1004 = vmax.f32 %v535, %v536
  %v1005 = vmax.f32 %v1004, %v537
  %v1006 = vsel %vm553, %v538, -inf
  %v1007 = vmax.f32 %v1005, %v1006
  %1008 = vmax.xlane.f32.xlu0 %v1007
  %v1009 = vpop.xlane.xlu0 %1008
  %v1010 = vsel %vm558, %v539, -inf
  %v1011 = vsel %vm558, %v540, -inf
  %v1012 = vmax.f32 %v1010, %v1011
  %v1013 = vsel %vm558, %v541, -inf
  %v1014 = vmax.f32 %v1012, %v1013
  %v1015 = vsel %vm564, %v542, -inf
  %v1016 = vmax.f32 %v1014, %v1015
  %1017 = vmax.xlane.f32.xlu0 %v1016
  %v1018 = vpop.xlane.xlu0 %1017
  %v1019 = vmax.f32 %v543, %v544
  %v1020 = vmax.f32 %v1019, %v545
  %v1021 = vsel %vm553, %v546, -inf
  %v1022 = vmax.f32 %v1020, %v1021
  %1023 = vmax.xlane.f32.xlu0 %v1022
  %v1024 = vpop.xlane.xlu0 %1023
  %v1025 = vsel %vm558, %v547, -inf
  %v1026 = vsel %vm558, %v548, -inf
  %v1027 = vmax.f32 %v1025, %v1026
  %v1028 = vsel %vm558, %v549, -inf
  %v1029 = vmax.f32 %v1027, %v1028
  %v1030 = vsel %vm564, %v550, -inf
  %v1031 = vmax.f32 %v1029, %v1030
  %1032 = vmax.xlane.f32.xlu0 %v1031
  %v1033 = vpop.xlane.xlu0 %1032
  %v1034 = vld [vmem:[%s1] sm:$0xff]
  %v1035 = vld [vmem:[%s1 + $0x8] sm:$0x3]
  %v1100 = vlaneseq
  %v1101 = vand.u32 %v1100, 127
  %v1102 = vlaneseq
  %v1103 = vshrl.u32 %v1102, 7
  %v1104 = vsub.s32 %v1101, %v1103
  %v1105 = vrot.slane %v557, %v1104
  %v1106 = vadd.s32 %v1101, 4294967288
  %v1107 = vlaneseq
  %v1108 = vshrl.u32 %v1107, 7
  %v1109 = vsub.s32 %v1106, %v1108
  %v1110 = vrot.slane %v568, %v1109
  %vm1111 = vcmask 130112
  %v1112 = vsel %vm1111, %v1110, %v1105
  %v1113 = vlaneseq
  %v1114 = vshrl.u32 %v1113, 7
  %v1115 = vsub.s32 %v1101, %v1114
  %v1116 = vrot.slane %v574, %v1115
  %v1117 = vlaneseq
  %v1118 = vshrl.u32 %v1117, 7
  %v1119 = vsub.s32 %v1106, %v1118
  %v1120 = vrot.slane %v583, %v1119
  %v1121 = vsel %vm1111, %v1120, %v1116
  %v1122 = vlaneseq
  %v1123 = vshrl.u32 %v1122, 7
  %v1124 = vsub.s32 %v1101, %v1123
  %v1125 = vrot.slane %v589, %v1124
  %v1126 = vlaneseq
  %v1127 = vshrl.u32 %v1126, 7
  %v1128 = vsub.s32 %v1106, %v1127
  %v1129 = vrot.slane %v598, %v1128
  %v1130 = vsel %vm1111, %v1129, %v1125
  %v1131 = vlaneseq
  %v1132 = vshrl.u32 %v1131, 7
  %v1133 = vsub.s32 %v1101, %v1132
  %v1134 = vrot.slane %v604, %v1133
  %v1135 = vlaneseq
  %v1136 = vshrl.u32 %v1135, 7
  %v1137 = vsub.s32 %v1106, %v1136
  %v1138 = vrot.slane %v613, %v1137
  %v1139 = vsel %vm1111, %v1138, %v1134
  %v1140 = vlaneseq
  %v1141 = vshrl.u32 %v1140, 7
  %v1142 = vsub.s32 %v1101, %v1141
  %v1143 = vrot.slane %v619, %v1142
  %v1144 = vlaneseq
  %v1145 = vshrl.u32 %v1144, 7
  %v1146 = vsub.s32 %v1106, %v1145
  %v1147 = vrot.slane %v628, %v1146
  %v1148 = vsel %vm1111, %v1147, %v1143
  %v1149 = vlaneseq
  %v1150 = vshrl.u32 %v1149, 7
  %v1151 = vsub.s32 %v1101, %v1150
  %v1152 = vrot.slane %v634, %v1151
  %v1153 = vlaneseq
  %v1154 = vshrl.u32 %v1153, 7
  %v1155 = vsub.s32 %v1106, %v1154
  %v1156 = vrot.slane %v643, %v1155
  %v1157 = vsel %vm1111, %v1156, %v1152
  %v1158 = vlaneseq
  %v1159 = vshrl.u32 %v1158, 7
  %v1160 = vsub.s32 %v1101, %v1159
  %v1161 = vrot.slane %v649, %v1160
  %v1162 = vlaneseq
  %v1163 = vshrl.u32 %v1162, 7
  %v1164 = vsub.s32 %v1106, %v1163
  %v1165 = vrot.slane %v658, %v1164
  %v1166 = vsel %vm1111, %v1165, %v1161
  %v1167 = vlaneseq
  %v1168 = vshrl.u32 %v1167, 7
  %v1169 = vsub.s32 %v1101, %v1168
  %v1170 = vrot.slane %v664, %v1169
  %v1171 = vlaneseq
  %v1172 = vshrl.u32 %v1171, 7
  %v1173 = vsub.s32 %v1106, %v1172
  %v1174 = vrot.slane %v673, %v1173
  %v1175 = vsel %vm1111, %v1174, %v1170
  %v1176 = vlaneseq
  %v1177 = vshrl.u32 %v1176, 7
  %v1178 = vsub.s32 %v1101, %v1177
  %v1179 = vrot.slane %v679, %v1178
  %v1180 = vlaneseq
  %v1181 = vshrl.u32 %v1180, 7
  %v1182 = vsub.s32 %v1106, %v1181
  %v1183 = vrot.slane %v688, %v1182
  %v1184 = vsel %vm1111, %v1183, %v1179
  %v1185 = vlaneseq
  %v1186 = vshrl.u32 %v1185, 7
  %v1187 = vsub.s32 %v1101, %v1186
  %v1188 = vrot.slane %v694, %v1187
  %v1189 = vlaneseq
  %v1190 = vshrl.u32 %v1189, 7
  %v1191 = vsub.s32 %v1106, %v1190
  %v1192 = vrot.slane %v703, %v1191
  %v1193 = vsel %vm1111, %v1192, %v1188
  %v1194 = vlaneseq
  %v1195 = vshrl.u32 %v1194, 7
  %v1196 = vsub.s32 %v1101, %v1195
  %v1197 = vrot.slane %v709, %v1196
  %v1198 = vlaneseq
  %v1199 = vshrl.u32 %v1198, 7
  %v1200 = vsub.s32 %v1106, %v1199
  %v1201 = vrot.slane %v718, %v1200
  %v1202 = vsel %vm1111, %v1201, %v1197
  %v1203 = vlaneseq
  %v1204 = vshrl.u32 %v1203, 7
  %v1205 = vsub.s32 %v1101, %v1204
  %v1206 = vrot.slane %v724, %v1205
  %v1207 = vlaneseq
  %v1208 = vshrl.u32 %v1207, 7
  %v1209 = vsub.s32 %v1106, %v1208
  %v1210 = vrot.slane %v733, %v1209
  %v1211 = vsel %vm1111, %v1210, %v1206
  %v1212 = vlaneseq
  %v1213 = vshrl.u32 %v1212, 7
  %v1214 = vsub.s32 %v1101, %v1213
  %v1215 = vrot.slane %v739, %v1214
  %v1216 = vlaneseq
  %v1217 = vshrl.u32 %v1216, 7
  %v1218 = vsub.s32 %v1106, %v1217
  %v1219 = vrot.slane %v748, %v1218
  %v1220 = vsel %vm1111, %v1219, %v1215
  %v1221 = vlaneseq
  %v1222 = vshrl.u32 %v1221, 7
  %v1223 = vsub.s32 %v1101, %v1222
  %v1224 = vrot.slane %v754, %v1223
  %v1225 = vlaneseq
  %v1226 = vshrl.u32 %v1225, 7
  %v1227 = vsub.s32 %v1106, %v1226
  %v1228 = vrot.slane %v763, %v1227
  %v1229 = vsel %vm1111, %v1228, %v1224
  %v1230 = vlaneseq
  %v1231 = vshrl.u32 %v1230, 7
  %v1232 = vsub.s32 %v1101, %v1231
  %v1233 = vrot.slane %v769, %v1232
  %v1234 = vlaneseq
  %v1235 = vshrl.u32 %v1234, 7
  %v1236 = vsub.s32 %v1106, %v1235
  %v1237 = vrot.slane %v778, %v1236
  %v1238 = vsel %vm1111, %v1237, %v1233
  %v1239 = vlaneseq
  %v1240 = vshrl.u32 %v1239, 7
  %v1241 = vsub.s32 %v1101, %v1240
  %v1242 = vrot.slane %v784, %v1241
  %v1243 = vlaneseq
  %v1244 = vshrl.u32 %v1243, 7
  %v1245 = vsub.s32 %v1106, %v1244
  %v1246 = vrot.slane %v793, %v1245
  %v1247 = vsel %vm1111, %v1246, %v1242
  %v1248 = vlaneseq
  %v1249 = vshrl.u32 %v1248, 7
  %v1250 = vsub.s32 %v1101, %v1249
  %v1251 = vrot.slane %v799, %v1250
  %v1252 = vlaneseq
  %v1253 = vshrl.u32 %v1252, 7
  %v1254 = vsub.s32 %v1106, %v1253
  %v1255 = vrot.slane %v808, %v1254
  %v1256 = vsel %vm1111, %v1255, %v1251
  %v1257 = vlaneseq
  %v1258 = vshrl.u32 %v1257, 7
  %v1259 = vsub.s32 %v1101, %v1258
  %v1260 = vrot.slane %v814, %v1259
  %v1261 = vlaneseq
  %v1262 = vshrl.u32 %v1261, 7
  %v1263 = vsub.s32 %v1106, %v1262
  %v1264 = vrot.slane %v823, %v1263
  %v1265 = vsel %vm1111, %v1264, %v1260
  %v1266 = vlaneseq
  %v1267 = vshrl.u32 %v1266, 7
  %v1268 = vsub.s32 %v1101, %v1267
  %v1269 = vrot.slane %v829, %v1268
  %v1270 = vlaneseq
  %v1271 = vshrl.u32 %v1270, 7
  %v1272 = vsub.s32 %v1106, %v1271
  %v1273 = vrot.slane %v838, %v1272
  %v1274 = vsel %vm1111, %v1273, %v1269
  %v1275 = vlaneseq
  %v1276 = vshrl.u32 %v1275, 7
  %v1277 = vsub.s32 %v1101, %v1276
  %v1278 = vrot.slane %v844, %v1277
  %v1279 = vlaneseq
  %v1280 = vshrl.u32 %v1279, 7
  %v1281 = vsub.s32 %v1106, %v1280
  %v1282 = vrot.slane %v853, %v1281
  %v1283 = vsel %vm1111, %v1282, %v1278
  %v1284 = vlaneseq
  %v1285 = vshrl.u32 %v1284, 7
  %v1286 = vsub.s32 %v1101, %v1285
  %v1287 = vrot.slane %v859, %v1286
  %v1288 = vlaneseq
  %v1289 = vshrl.u32 %v1288, 7
  %v1290 = vsub.s32 %v1106, %v1289
  %v1291 = vrot.slane %v868, %v1290
  %v1292 = vsel %vm1111, %v1291, %v1287
  %v1293 = vlaneseq
  %v1294 = vshrl.u32 %v1293, 7
  %v1295 = vsub.s32 %v1101, %v1294
  %v1296 = vrot.slane %v874, %v1295
  %v1297 = vlaneseq
  %v1298 = vshrl.u32 %v1297, 7
  %v1299 = vsub.s32 %v1106, %v1298
  %v1300 = vrot.slane %v883, %v1299
  %v1301 = vsel %vm1111, %v1300, %v1296
  %v1302 = vlaneseq
  %v1303 = vshrl.u32 %v1302, 7
  %v1304 = vsub.s32 %v1101, %v1303
  %v1305 = vrot.slane %v889, %v1304
  %v1306 = vlaneseq
  %v1307 = vshrl.u32 %v1306, 7
  %v1308 = vsub.s32 %v1106, %v1307
  %v1309 = vrot.slane %v898, %v1308
  %v1310 = vsel %vm1111, %v1309, %v1305
  %v1311 = vlaneseq
  %v1312 = vshrl.u32 %v1311, 7
  %v1313 = vsub.s32 %v1101, %v1312
  %v1314 = vrot.slane %v904, %v1313
  %v1315 = vlaneseq
  %v1316 = vshrl.u32 %v1315, 7
  %v1317 = vsub.s32 %v1106, %v1316
  %v1318 = vrot.slane %v913, %v1317
  %v1319 = vsel %vm1111, %v1318, %v1314
  %v1320 = vlaneseq
  %v1321 = vshrl.u32 %v1320, 7
  %v1322 = vsub.s32 %v1101, %v1321
  %v1323 = vrot.slane %v919, %v1322
  %v1324 = vlaneseq
  %v1325 = vshrl.u32 %v1324, 7
  %v1326 = vsub.s32 %v1106, %v1325
  %v1327 = vrot.slane %v928, %v1326
  %v1328 = vsel %vm1111, %v1327, %v1323
  %v1329 = vlaneseq
  %v1330 = vshrl.u32 %v1329, 7
  %v1331 = vsub.s32 %v1101, %v1330
  %v1332 = vrot.slane %v934, %v1331
  %v1333 = vlaneseq
  %v1334 = vshrl.u32 %v1333, 7
  %v1335 = vsub.s32 %v1106, %v1334
  %v1336 = vrot.slane %v943, %v1335
  %v1337 = vsel %vm1111, %v1336, %v1332
  %v1338 = vlaneseq
  %v1339 = vshrl.u32 %v1338, 7
  %v1340 = vsub.s32 %v1101, %v1339
  %v1341 = vrot.slane %v949, %v1340
  %v1342 = vlaneseq
  %v1343 = vshrl.u32 %v1342, 7
  %v1344 = vsub.s32 %v1106, %v1343
  %v1345 = vrot.slane %v958, %v1344
  %v1346 = vsel %vm1111, %v1345, %v1341
  %v1347 = vlaneseq
  %v1348 = vshrl.u32 %v1347, 7
  %v1349 = vsub.s32 %v1101, %v1348
  %v1350 = vrot.slane %v964, %v1349
  %v1351 = vlaneseq
  %v1352 = vshrl.u32 %v1351, 7
  %v1353 = vsub.s32 %v1106, %v1352
  %v1354 = vrot.slane %v973, %v1353
  %v1355 = vsel %vm1111, %v1354, %v1350
  %v1356 = vlaneseq
  %v1357 = vshrl.u32 %v1356, 7
  %v1358 = vsub.s32 %v1101, %v1357
  %v1359 = vrot.slane %v979, %v1358
  %v1360 = vlaneseq
  %v1361 = vshrl.u32 %v1360, 7
  %v1362 = vsub.s32 %v1106, %v1361
  %v1363 = vrot.slane %v988, %v1362
  %v1364 = vsel %vm1111, %v1363, %v1359
  %v1365 = vlaneseq
  %v1366 = vshrl.u32 %v1365, 7
  %v1367 = vsub.s32 %v1101, %v1366
  %v1368 = vrot.slane %v994, %v1367
  %v1369 = vlaneseq
  %v1370 = vshrl.u32 %v1369, 7
  %v1371 = vsub.s32 %v1106, %v1370
  %v1372 = vrot.slane %v1003, %v1371
  %v1373 = vsel %vm1111, %v1372, %v1368
  %v1374 = vlaneseq
  %v1375 = vshrl.u32 %v1374, 7
  %v1376 = vsub.s32 %v1101, %v1375
  %v1377 = vrot.slane %v1009, %v1376
  %v1378 = vlaneseq
  %v1379 = vshrl.u32 %v1378, 7
  %v1380 = vsub.s32 %v1106, %v1379
  %v1381 = vrot.slane %v1018, %v1380
  %v1382 = vsel %vm1111, %v1381, %v1377
  %v1383 = vlaneseq
  %v1384 = vshrl.u32 %v1383, 7
  %v1385 = vsub.s32 %v1101, %v1384
  %v1386 = vrot.slane %v1024, %v1385
  %v1387 = vlaneseq
  %v1388 = vshrl.u32 %v1387, 7
  %v1389 = vsub.s32 %v1106, %v1388
  %v1390 = vrot.slane %v1033, %v1389
  %v1391 = vsel %vm1111, %v1390, %v1386
  %vm1392 = vcmask 1041409
  %v1393 = vsel %vm1392, %v1121, %v1112
  %vm1394 = vcmask 1042434
  %v1395 = vsel %vm1394, %v1130, %v1393
  %vm1396 = vcmask 1043459
  %v1397 = vsel %vm1396, %v1139, %v1395
  %vm1398 = vcmask 1044484
  %v1399 = vsel %vm1398, %v1148, %v1397
  %vm1400 = vcmask 1045509
  %v1401 = vsel %vm1400, %v1157, %v1399
  %vm1402 = vcmask 1046534
  %v1403 = vsel %vm1402, %v1166, %v1401
  %vm1404 = vcmask 1047559
  %v1405 = vsel %vm1404, %v1175, %v1403
  %v1406 = vsel %vm1392, %v1193, %v1184
  %v1407 = vsel %vm1394, %v1202, %v1406
  %v1408 = vsel %vm1396, %v1211, %v1407
  %v1409 = vsel %vm1398, %v1220, %v1408
  %v1410 = vsel %vm1400, %v1229, %v1409
  %v1411 = vsel %vm1402, %v1238, %v1410
  %v1412 = vsel %vm1404, %v1247, %v1411
  %v1413 = vsel %vm1392, %v1265, %v1256
  %v1414 = vsel %vm1394, %v1274, %v1413
  %v1415 = vsel %vm1396, %v1283, %v1414
  %v1416 = vsel %vm1398, %v1292, %v1415
  %v1417 = vsel %vm1400, %v1301, %v1416
  %v1418 = vsel %vm1402, %v1310, %v1417
  %v1419 = vsel %vm1404, %v1319, %v1418
  %v1420 = vsel %vm1392, %v1337, %v1328
  %v1421 = vsel %vm1394, %v1346, %v1420
  %v1422 = vsel %vm1396, %v1355, %v1421
  %v1423 = vsel %vm1398, %v1364, %v1422
  %v1424 = vsel %vm1400, %v1373, %v1423
  %v1425 = vsel %vm1402, %v1382, %v1424
  %v1426 = vsel %vm1404, %v1391, %v1425
  %vm1427 = vcmask 80896
  %v1428 = vsel %vm1427, %v1405, 0
  %v1430 = vsel %vm1427, %v1412, 0
  %v1432 = vsel %vm1427, %v1419, 0
  %v1434 = vsel %vm1427, %v1426, 0
  %v1437 = vsel %vm558, %v1035, 0
  %1439 = vmatprep.subr.mxu0 0.0
  %1440 = vmatpush1.msra.mxu0 %v1034
  %1441 = vmatprep.subr.mxu0 0.0
  %1442 = vmatpush1.msra.mxu0 %v1437
  %1443 = vmatprep.subr.mxu0 0.0
  %1444 = vmatpush1.msra.mxu0 0.0
  %1445 = vmatprep.subr.mxu0 0.0
  %1446 = vmatpush1.msra.mxu0 0.0
  %1447 = vmatprep.subr.mxu0 0.0
  %1448 = vmatpush1.msra.mxu0 0.0
  %1449 = vmatprep.subr.mxu0 0.0
  %1450 = vmatpush1.msra.mxu0 0.0
  %1451 = vmatprep.subr.mxu0 0.0
  %1452 = vmatpush1.msra.mxu0 0.0
  %1453 = vmatprep.subr.mxu0 0.0
  %1454 = vmatpush1.msra.mxu0 0.0
  %1455 = vmatprep.subr.mxu0 0.0
  %1456 = vmatpush1.msra.mxu0 0.0
  %1457 = vmatprep.subr.mxu0 0.0
  %1458 = vmatpush1.msra.mxu0 0.0
  %1459 = vmatprep.subr.mxu0 0.0
  %1460 = vmatpush1.msra.mxu0 0.0
  %1461 = vmatprep.subr.mxu0 0.0
  %1462 = vmatpush1.msra.mxu0 0.0
  %1463 = vmatprep.subr.mxu0 0.0
  %1464 = vmatpush1.msra.mxu0 0.0
  %1465 = vmatprep.subr.mxu0 0.0
  %1466 = vmatpush1.msra.mxu0 0.0
  %1467 = vmatprep.subr.mxu0 0.0
  %1468 = vmatpush1.msra.mxu0 0.0
  %1469 = vmatprep.subr.mxu0 0.0
  %1470 = vmatpush1.msra.mxu0 0.0
  %1471 = vmatprep.subr.mxu0 0.0
  %1472 = vmatpush1.msra.mxu0 0.0
  %1473 = vmatprep.subr.mxu0 0.0
  %1474 = vmatpush1.msra.mxu0 0.0
  %1475 = vmatprep.subr.mxu0 0.0
  %1476 = vmatpush1.msra.mxu0 0.0
  %1477 = vmatprep.subr.mxu0 0.0
  %1478 = vmatpush1.msra.mxu0 0.0
  %1479 = vmatprep.subr.mxu0 0.0
  %1480 = vmatpush1.msra.mxu0 0.0
  %1481 = vmatprep.subr.mxu0 0.0
  %1482 = vmatpush1.msra.mxu0 0.0
  %1483 = vmatprep.subr.mxu0 0.0
  %1484 = vmatpush1.msra.mxu0 0.0
  %1485 = vmatprep.subr.mxu0 0.0
  %1486 = vmatpush1.msra.mxu0 0.0
  %1487 = vmatprep.subr.mxu0 0.0
  %1488 = vmatpush1.msra.mxu0 0.0
  %1489 = vmatprep.subr.mxu0 0.0
  %1490 = vmatpush1.msra.mxu0 0.0
  %1491 = vmatprep.subr.mxu0 0.0
  %1492 = vmatpush1.msra.mxu0 0.0
  %1493 = vmatprep.subr.mxu0 0.0
  %1494 = vmatpush1.msra.mxu0 0.0
  %1495 = vmatprep.subr.mxu0 0.0
  %1496 = vmatpush1.msra.mxu0 0.0
  %1497 = vmatprep.subr.mxu0 0.0
  %1498 = vmatpush1.msra.mxu0 0.0
  %1499 = vmatprep.subr.mxu0 0.0
  %1500 = vmatpush1.msra.mxu0 0.0
  %1501 = vmatprep.subr.mxu0 0.0
  %1502 = vmatpush1.msra.mxu0 0.0
  %1503 = vmatprep.mubr.f32.mxu0 0.0
  %1504 = vmatmul.mubr.f32.gmra.mrb[0].mxu0 %v1428
  %v1505 = vpop.f32.mrb[0].mxu0
  %v1506 = vadd.f32 0.0, %v1505
  %v1507 = vpop.f32.mrb[0].mxu0
  %1508 = vmatprep.mubr.f32.mxu0 0.0
  %1509 = vmatmul.mubr.f32.gmra.mrb[0].mxu0 %v1430
  %v1510 = vpop.f32.mrb[0].mxu0
  %v1511 = vadd.f32 0.0, %v1510
  %v1512 = vpop.f32.mrb[0].mxu0
  %1513 = vmatprep.mubr.f32.mxu0 0.0
  %1514 = vmatmul.mubr.f32.gmra.mrb[0].mxu0 %v1432
  %v1515 = vpop.f32.mrb[0].mxu0
  %v1516 = vadd.f32 0.0, %v1515
  %v1517 = vpop.f32.mrb[0].mxu0
  %1518 = vmatprep.mubr.f32.mxu0 0.0
  %1519 = vmatmul.mubr.f32.gmra.mrb[0].mxu0 %v1434
  %v1520 = vpop.f32.mrb[0].mxu0
  %v1521 = vadd.f32 0.0, %v1520
  %v1522 = vpop.f32.mrb[0].mxu0
  %1523 = vdwg.mxu0
  %v1524 = vld [vmem:[%s2] sm:$0x1]
  %v1525 = vld [vmem:[%s3] sm:$0x1]
  %vm1526 = vcmask 261120
  %v1527 = vsel %vm1526, %v1506, 0.0
  %v1528 = vsel %vm1526, %v1511, 0.0
  %v1529 = vadd.f32 %v1527, %v1528
  %v1530 = vsel %vm1526, %v1516, 0.0
  %v1531 = vadd.f32 %v1529, %v1530
  %v1532 = vsel %vm1526, %v1521, 0.0
  %v1533 = vadd.f32 %v1531, %v1532
  %v1534 = vrot.slane %v1533, 4
  %v1535 = vadd.f32 %v1533, %v1534
  %v1536 = vrot.slane %v1535, 2
  %v1537 = vadd.f32 %v1535, %v1536
  %v1538 = vrot.slane %v1537, 1
  %v1539 = vadd.f32 %v1537, %v1538
  %v1540 = vrcp.pop 32.0
  %v1541 = vmul.f32 %v1539, %v1540
  %v1542 = vsub.f32 %v1506, %v1541
  %v1543 = vsub.f32 %v1511, %v1541
  %v1544 = vsub.f32 %v1516, %v1541
  %v1545 = vsub.f32 %v1521, %v1541
  %v1546 = vmul.f32 %v1542, %v1542
  %v1547 = vmul.f32 %v1543, %v1543
  %v1548 = vmul.f32 %v1544, %v1544
  %v1549 = vmul.f32 %v1545, %v1545
  %v1550 = vsel %vm1526, %v1546, 0.0
  %v1551 = vsel %vm1526, %v1547, 0.0
  %v1552 = vadd.f32 %v1550, %v1551
  %v1553 = vsel %vm1526, %v1548, 0.0
  %v1554 = vadd.f32 %v1552, %v1553
  %v1555 = vsel %vm1526, %v1549, 0.0
  %v1556 = vadd.f32 %v1554, %v1555
  %v1557 = vrot.slane %v1556, 4
  %v1558 = vadd.f32 %v1556, %v1557
  %v1559 = vrot.slane %v1558, 2
  %v1560 = vadd.f32 %v1558, %v1559
  %v1561 = vrot.slane %v1560, 1
  %v1562 = vadd.f32 %v1560, %v1561
  %v1563 = vmul.f32 %v1562, %v1540
  %v1564 = vadd.f32 %v1563, 1e-05
  %v1565 = vrsqrt.pop %v1564
  %v1566 = vmul.f32 %v1542, %v1565
  %v1567 = vmul.f32 %v1543, %v1565
  %v1568 = vmul.f32 %v1544, %v1565
  %v1569 = vmul.f32 %v1545, %v1565
  %v1571 = vlaneseq
  %v1572 = vshrl.u32 %v1571, 7
  %v1573 = vsub.s32 0, %v1572
  %v1574 = vrot.slane %v1524, %v1573
  %v1576 = vmul.f32 %v1566, %v1574
  %v1577 = vmul.f32 %v1567, %v1574
  %v1578 = vmul.f32 %v1568, %v1574
  %v1579 = vmul.f32 %v1569, %v1574
  %v1581 = vlaneseq
  %v1582 = vshrl.u32 %v1581, 7
  %v1583 = vsub.s32 0, %v1582
  %v1584 = vrot.slane %v1525, %v1583
  %v1586 = vadd.f32 %v1576, %v1584
  %v1587 = vadd.f32 %v1577, %v1584
  %v1588 = vadd.f32 %v1578, %v1584
  %v1589 = vadd.f32 %v1579, %v1584
  %v1590 = vmax.f32 %v1586, 0.0
  %v1591 = vmax.f32 %v1587, 0.0
  %v1592 = vmax.f32 %v1588, 0.0
  %v1593 = vmax.f32 %v1589, 0.0
  %v1594 = vld [vmem:[%s4] sm:$0xff]
  %v1595 = vld [vmem:[%s4 + $0x8] sm:$0xff]
  %v1596 = vld [vmem:[%s4 + $0x10] sm:$0xff]
  %v1597 = vld [vmem:[%s4 + $0x18] sm:$0xff]
  %v1598 = vld [vmem:[%s4 + $0x20] sm:$0xff]
  %v1599 = vld [vmem:[%s4 + $0x28] sm:$0xff]
  %v1600 = vld [vmem:[%s4 + $0x30] sm:$0xff]
  %v1601 = vld [vmem:[%s4 + $0x38] sm:$0xff]
  %v1602 = vld [vmem:[%s4 + $0x40] sm:$0xff]
  %v1603 = vld [vmem:[%s4 + $0x48] sm:$0xff]
  %v1604 = vld [vmem:[%s4 + $0x50] sm:$0xff]
  %v1605 = vld [vmem:[%s4 + $0x58] sm:$0xff]
  %v1607 = vsel %vm1526, %v1594, 0
  %v1610 = vsel %vm1526, %v1595, 0
  %v1613 = vsel %vm1526, %v1596, 0
  %v1616 = vsel %vm1526, %v1597, 0
  %v1619 = vsel %vm1526, %v1598, 0
  %v1622 = vsel %vm1526, %v1599, 0
  %v1625 = vsel %vm1526, %v1600, 0
  %v1628 = vsel %vm1526, %v1601, 0
  %v1631 = vsel %vm1526, %v1602, 0
  %v1634 = vsel %vm1526, %v1603, 0
  %v1637 = vsel %vm1526, %v1604, 0
  %v1640 = vsel %vm1526, %v1605, 0
  %1642 = vmatprep.subr.mxu0 0.0
  %1643 = vmatpush1.msra.mxu0 %v1590
  %1644 = vmatprep.subr.mxu0 0.0
  %1645 = vmatpush1.msra.mxu0 %v1591
  %1646 = vmatprep.subr.mxu0 0.0
  %1647 = vmatpush1.msra.mxu0 %v1592
  %1648 = vmatprep.subr.mxu0 0.0
  %1649 = vmatpush1.msra.mxu0 %v1593
  %1650 = vmatprep.subr.mxu0 0.0
  %1651 = vmatpush1.msra.mxu0 0.0
  %1652 = vmatprep.subr.mxu0 0.0
  %1653 = vmatpush1.msra.mxu0 0.0
  %1654 = vmatprep.subr.mxu0 0.0
  %1655 = vmatpush1.msra.mxu0 0.0
  %1656 = vmatprep.subr.mxu0 0.0
  %1657 = vmatpush1.msra.mxu0 0.0
  %1658 = vmatprep.subr.mxu0 0.0
  %1659 = vmatpush1.msra.mxu0 0.0
  %1660 = vmatprep.subr.mxu0 0.0
  %1661 = vmatpush1.msra.mxu0 0.0
  %1662 = vmatprep.subr.mxu0 0.0
  %1663 = vmatpush1.msra.mxu0 0.0
  %1664 = vmatprep.subr.mxu0 0.0
  %1665 = vmatpush1.msra.mxu0 0.0
  %1666 = vmatprep.subr.mxu0 0.0
  %1667 = vmatpush1.msra.mxu0 0.0
  %1668 = vmatprep.subr.mxu0 0.0
  %1669 = vmatpush1.msra.mxu0 0.0
  %1670 = vmatprep.subr.mxu0 0.0
  %1671 = vmatpush1.msra.mxu0 0.0
  %1672 = vmatprep.subr.mxu0 0.0
  %1673 = vmatpush1.msra.mxu0 0.0
  %1674 = vmatprep.subr.mxu0 0.0
  %1675 = vmatpush1.msra.mxu0 0.0
  %1676 = vmatprep.subr.mxu0 0.0
  %1677 = vmatpush1.msra.mxu0 0.0
  %1678 = vmatprep.subr.mxu0 0.0
  %1679 = vmatpush1.msra.mxu0 0.0
  %1680 = vmatprep.subr.mxu0 0.0
  %1681 = vmatpush1.msra.mxu0 0.0
  %1682 = vmatprep.subr.mxu0 0.0
  %1683 = vmatpush1.msra.mxu0 0.0
  %1684 = vmatprep.subr.mxu0 0.0
  %1685 = vmatpush1.msra.mxu0 0.0
  %1686 = vmatprep.subr.mxu0 0.0
  %1687 = vmatpush1.msra.mxu0 0.0
  %1688 = vmatprep.subr.mxu0 0.0
  %1689 = vmatpush1.msra.mxu0 0.0
  %1690 = vmatprep.subr.mxu0 0.0
  %1691 = vmatpush1.msra.mxu0 0.0
  %1692 = vmatprep.subr.mxu0 0.0
  %1693 = vmatpush1.msra.mxu0 0.0
  %1694 = vmatprep.subr.mxu0 0.0
  %1695 = vmatpush1.msra.mxu0 0.0
  %1696 = vmatprep.subr.mxu0 0.0
  %1697 = vmatpush1.msra.mxu0 0.0
  %1698 = vmatprep.subr.mxu0 0.0
  %1699 = vmatpush1.msra.mxu0 0.0
  %1700 = vmatprep.subr.mxu0 0.0
  %1701 = vmatpush1.msra.mxu0 0.0
  %1702 = vmatprep.subr.mxu0 0.0
  %1703 = vmatpush1.msra.mxu0 0.0
  %1704 = vmatprep.subr.mxu0 0.0
  %1705 = vmatpush1.msra.mxu0 0.0
  %1706 = vmatprep.mubr.f32.mxu0 0.0
  %1707 = vmatmul.mubr.f32.gmra.mrb[0].mxu0 %v1607
  %v1708 = vpop.f32.mrb[0].mxu0
  %v1709 = vadd.f32 0.0, %v1708
  %v1710 = vpop.f32.mrb[0].mxu0
  %1711 = vmatprep.mubr.f32.mxu0 0.0
  %1712 = vmatmul.mubr.f32.gmra.mrb[0].mxu0 %v1610
  %v1713 = vpop.f32.mrb[0].mxu0
  %v1714 = vadd.f32 0.0, %v1713
  %v1715 = vpop.f32.mrb[0].mxu0
  %1716 = vmatprep.mubr.f32.mxu0 0.0
  %1717 = vmatmul.mubr.f32.gmra.mrb[0].mxu0 %v1613
  %v1718 = vpop.f32.mrb[0].mxu0
  %v1719 = vadd.f32 0.0, %v1718
  %v1720 = vpop.f32.mrb[0].mxu0
  %1721 = vmatprep.mubr.f32.mxu0 0.0
  %1722 = vmatmul.mubr.f32.gmra.mrb[0].mxu0 %v1616
  %v1723 = vpop.f32.mrb[0].mxu0
  %v1724 = vadd.f32 0.0, %v1723
  %v1725 = vpop.f32.mrb[0].mxu0
  %1726 = vmatprep.mubr.f32.mxu0 0.0
  %1727 = vmatmul.mubr.f32.gmra.mrb[0].mxu0 %v1619
  %v1728 = vpop.f32.mrb[0].mxu0
  %v1729 = vadd.f32 0.0, %v1728
  %v1730 = vpop.f32.mrb[0].mxu0
  %1731 = vmatprep.mubr.f32.mxu0 0.0
  %1732 = vmatmul.mubr.f32.gmra.mrb[0].mxu0 %v1622
  %v1733 = vpop.f32.mrb[0].mxu0
  %v1734 = vadd.f32 0.0, %v1733
  %v1735 = vpop.f32.mrb[0].mxu0
  %1736 = vmatprep.mubr.f32.mxu0 0.0
  %1737 = vmatmul.mubr.f32.gmra.mrb[0].mxu0 %v1625
  %v1738 = vpop.f32.mrb[0].mxu0
  %v1739 = vadd.f32 0.0, %v1738
  %v1740 = vpop.f32.mrb[0].mxu0
  %1741 = vmatprep.mubr.f32.mxu0 0.0
  %1742 = vmatmul.mubr.f32.gmra.mrb[0].mxu0 %v1628
  %v1743 = vpop.f32.mrb[0].mxu0
  %v1744 = vadd.f32 0.0, %v1743
  %v1745 = vpop.f32.mrb[0].mxu0
  %1746 = vmatprep.mubr.f32.mxu0 0.0
  %1747 = vmatmul.mubr.f32.gmra.mrb[0].mxu0 %v1631
  %v1748 = vpop.f32.mrb[0].mxu0
  %v1749 = vadd.f32 0.0, %v1748
  %v1750 = vpop.f32.mrb[0].mxu0
  %1751 = vmatprep.mubr.f32.mxu0 0.0
  %1752 = vmatmul.mubr.f32.gmra.mrb[0].mxu0 %v1634
  %v1753 = vpop.f32.mrb[0].mxu0
  %v1754 = vadd.f32 0.0, %v1753
  %v1755 = vpop.f32.mrb[0].mxu0
  %1756 = vmatprep.mubr.f32.mxu0 0.0
  %1757 = vmatmul.mubr.f32.gmra.mrb[0].mxu0 %v1637
  %v1758 = vpop.f32.mrb[0].mxu0
  %v1759 = vadd.f32 0.0, %v1758
  %v1760 = vpop.f32.mrb[0].mxu0
  %1761 = vmatprep.mubr.f32.mxu0 0.0
  %1762 = vmatmul.mubr.f32.gmra.mrb[0].mxu0 %v1640
  %v1763 = vpop.f32.mrb[0].mxu0
  %v1764 = vadd.f32 0.0, %v1763
  %v1765 = vpop.f32.mrb[0].mxu0
  %1766 = vdwg.mxu0
  %1768 = vrot.lane.b32.xlu0 %v1714, 32
  %v1769 = vpop.permute.xlu0 %1768
  %1772 = vrot.lane.b32.xlu0 %v1719, 64
  %v1773 = vpop.permute.xlu0 %1772
  %1776 = vrot.lane.b32.xlu0 %v1724, 96
  %v1777 = vpop.permute.xlu0 %1776
  %1780 = vrot.lane.b32.xlu0 %v1734, 32
  %v1781 = vpop.permute.xlu0 %1780
  %1784 = vrot.lane.b32.xlu0 %v1739, 64
  %v1785 = vpop.permute.xlu0 %1784
  %1788 = vrot.lane.b32.xlu0 %v1744, 96
  %v1789 = vpop.permute.xlu0 %1788
  %1792 = vrot.lane.b32.xlu0 %v1754, 32
  %v1793 = vpop.permute.xlu0 %1792
  %1796 = vrot.lane.b32.xlu0 %v1759, 64
  %v1797 = vpop.permute.xlu0 %1796
  %1800 = vrot.lane.b32.xlu0 %v1764, 96
  %v1801 = vpop.permute.xlu0 %1800
  %v1803 = vsel %vm1526, %v1709, %v1769
  %vm1804 = vcmask 523264
  %v1805 = vsel %vm1804, %v1803, %v1773
  %vm1806 = vcmask 785408
  %v1807 = vsel %vm1806, %v1805, %v1777
  %v1808 = vsel %vm1526, %v1729, %v1781
  %v1809 = vsel %vm1804, %v1808, %v1785
  %v1810 = vsel %vm1806, %v1809, %v1789
  %v1811 = vsel %vm1526, %v1749, %v1793
  %v1812 = vsel %vm1804, %v1811, %v1797
  %v1813 = vsel %vm1806, %v1812, %v1801
  %v1814 = vpack.c.bf16 %v1807, %v1807
  %v1815 = vpack.c.bf16 %v1810, %v1810
  %v1816 = vpack.c.bf16 %v1813, %v1813
  %v1817 = vld [vmem:[%s5] sm:$0xf]
  %v1818 = vld [vmem:[%s5 + $0x4] sm:$0xf]
  %v1819 = vld [vmem:[%s5 + $0x8] sm:$0xf]
  %v1820 = vld [vmem:[%s5 + $0xc] sm:$0xf]
  %v1821 = vld [vmem:[%s5 + $0x10] sm:$0xf]
  %v1822 = vld [vmem:[%s5 + $0x14] sm:$0xf]
  %v1823 = vld [vmem:[%s5 + $0x18] sm:$0xf]
  %v1824 = vld [vmem:[%s5 + $0x1c] sm:$0xf]
  %v1825 = vld [vmem:[%s5 + $0x20] sm:$0xf]
  %v1826 = vld [vmem:[%s5 + $0x24] sm:$0xf]
  %v1827 = vld [vmem:[%s5 + $0x28] sm:$0xf]
  %v1828 = vld [vmem:[%s5 + $0x2c] sm:$0xf]
  %v1829 = vld [vmem:[%s5 + $0x30] sm:$0xf]
  %v1830 = vld [vmem:[%s5 + $0x34] sm:$0xf]
  %v1831 = vld [vmem:[%s5 + $0x38] sm:$0xf]
  %v1832 = vld [vmem:[%s5 + $0x3c] sm:$0xf]
  %v1833 = vld [vmem:[%s5 + $0x40] sm:$0xf]
  %v1834 = vld [vmem:[%s5 + $0x44] sm:$0xf]
  %v1835 = vld [vmem:[%s5 + $0x48] sm:$0xf]
  %v1836 = vld [vmem:[%s5 + $0x4c] sm:$0xf]
  %v1837 = vld [vmem:[%s5 + $0x50] sm:$0xf]
  %v1838 = vld [vmem:[%s5 + $0x54] sm:$0xf]
  %v1839 = vld [vmem:[%s5 + $0x58] sm:$0xf]
  %v1840 = vld [vmem:[%s5 + $0x5c] sm:$0xf]
  %v1841 = vld [vmem:[%s5 + $0x60] sm:$0xf]
  %v1842 = vld [vmem:[%s5 + $0x64] sm:$0xf]
  %v1843 = vld [vmem:[%s5 + $0x68] sm:$0xf]
  %v1844 = vld [vmem:[%s5 + $0x6c] sm:$0xf]
  %v1845 = vld [vmem:[%s5 + $0x70] sm:$0xf]
  %v1846 = vld [vmem:[%s5 + $0x74] sm:$0xf]
  %v1847 = vld [vmem:[%s5 + $0x78] sm:$0xf]
  %v1848 = vld [vmem:[%s5 + $0x7c] sm:$0xf]
  %v1849 = vld [vmem:[%s5 + $0x80] sm:$0xf]
  %v1850 = vld [vmem:[%s5 + $0x84] sm:$0xf]
  %v1851 = vld [vmem:[%s5 + $0x88] sm:$0xf]
  %v1852 = vld [vmem:[%s5 + $0x8c] sm:$0xf]
  %v1853 = vld [vmem:[%s5 + $0x90] sm:$0xf]
  %v1854 = vld [vmem:[%s5 + $0x94] sm:$0xf]
  %v1855 = vld [vmem:[%s5 + $0x98] sm:$0xf]
  %v1856 = vld [vmem:[%s5 + $0x9c] sm:$0xf]
  %v1857 = vld [vmem:[%s5 + $0xa0] sm:$0xf]
  %v1858 = vld [vmem:[%s5 + $0xa4] sm:$0xf]
  %v1859 = vld [vmem:[%s5 + $0xa8] sm:$0xf]
  %v1860 = vld [vmem:[%s5 + $0xac] sm:$0xf]
  %v1861 = vld [vmem:[%s5 + $0xb0] sm:$0xf]
  %v1862 = vld [vmem:[%s5 + $0xb4] sm:$0xf]
  %v1863 = vld [vmem:[%s5 + $0xb8] sm:$0xf]
  %v1864 = vld [vmem:[%s5 + $0xbc] sm:$0xf]
  %v1913 = vunpack.c.l.b16 %v1817
  %v1914 = vunpack.c.l.b16 %v1818
  %v1915 = vunpack.c.l.b16 %v1819
  %v1916 = vunpack.c.l.b16 %v1820
  %v1917 = vunpack.c.l.b16 %v1821
  %v1918 = vunpack.c.l.b16 %v1822
  %v1919 = vunpack.c.l.b16 %v1823
  %v1920 = vunpack.c.l.b16 %v1824
  %v1921 = vunpack.c.l.b16 %v1825
  %v1922 = vunpack.c.l.b16 %v1826
  %v1923 = vunpack.c.l.b16 %v1827
  %v1924 = vunpack.c.l.b16 %v1828
  %v1925 = vunpack.c.l.b16 %v1829
  %v1926 = vunpack.c.l.b16 %v1830
  %v1927 = vunpack.c.l.b16 %v1831
  %v1928 = vunpack.c.l.b16 %v1832
  %v1929 = vunpack.c.l.b16 %v1833
  %v1930 = vunpack.c.l.b16 %v1834
  %v1931 = vunpack.c.l.b16 %v1835
  %v1932 = vunpack.c.l.b16 %v1836
  %v1933 = vunpack.c.l.b16 %v1837
  %v1934 = vunpack.c.l.b16 %v1838
  %v1935 = vunpack.c.l.b16 %v1839
  %v1936 = vunpack.c.l.b16 %v1840
  %v1937 = vunpack.c.l.b16 %v1841
  %v1938 = vunpack.c.l.b16 %v1842
  %v1939 = vunpack.c.l.b16 %v1843
  %v1940 = vunpack.c.l.b16 %v1844
  %v1941 = vunpack.c.l.b16 %v1845
  %v1942 = vunpack.c.l.b16 %v1846
  %v1943 = vunpack.c.l.b16 %v1847
  %v1944 = vunpack.c.l.b16 %v1848
  %v1945 = vunpack.c.l.b16 %v1849
  %v1946 = vunpack.c.l.b16 %v1850
  %v1947 = vunpack.c.l.b16 %v1851
  %v1948 = vunpack.c.l.b16 %v1852
  %v1949 = vunpack.c.l.b16 %v1853
  %v1950 = vunpack.c.l.b16 %v1854
  %v1951 = vunpack.c.l.b16 %v1855
  %v1952 = vunpack.c.l.b16 %v1856
  %v1953 = vunpack.c.l.b16 %v1857
  %v1954 = vunpack.c.l.b16 %v1858
  %v1955 = vunpack.c.l.b16 %v1859
  %v1956 = vunpack.c.l.b16 %v1860
  %v1957 = vunpack.c.l.b16 %v1861
  %v1958 = vunpack.c.l.b16 %v1862
  %v1959 = vunpack.c.l.b16 %v1863
  %v1960 = vunpack.c.l.b16 %v1864
  %v1961 = vpack.c.b16 %v1914, %v1913
  %v1962 = vpack.c.b16 %v1916, %v1915
  %v1963 = vpack.c.b16 %v1918, %v1917
  %v1964 = vpack.c.b16 %v1920, %v1919
  %v1965 = vpack.c.b16 %v1922, %v1921
  %v1966 = vpack.c.b16 %v1924, %v1923
  %v1967 = vpack.c.b16 %v1926, %v1925
  %v1968 = vpack.c.b16 %v1928, %v1927
  %v1969 = vpack.c.b16 %v1930, %v1929
  %v1970 = vpack.c.b16 %v1932, %v1931
  %v1971 = vpack.c.b16 %v1934, %v1933
  %v1972 = vpack.c.b16 %v1936, %v1935
  %v1973 = vpack.c.b16 %v1938, %v1937
  %v1974 = vpack.c.b16 %v1940, %v1939
  %v1975 = vpack.c.b16 %v1942, %v1941
  %v1976 = vpack.c.b16 %v1944, %v1943
  %v1977 = vpack.c.b16 %v1946, %v1945
  %v1978 = vpack.c.b16 %v1948, %v1947
  %v1979 = vpack.c.b16 %v1950, %v1949
  %v1980 = vpack.c.b16 %v1952, %v1951
  %v1981 = vpack.c.b16 %v1954, %v1953
  %v1982 = vpack.c.b16 %v1956, %v1955
  %v1983 = vpack.c.b16 %v1958, %v1957
  %v1984 = vpack.c.b16 %v1960, %v1959
  %2009 = vmatprep.subr.bf16.mxu0 0
  %2010 = vmatpush1.bf16.msra.mxu0 %v1961
  %2011 = vmatprep.subr.bf16.mxu0 0
  %2012 = vmatpush1.bf16.msra.mxu0 %v1962
  %2013 = vmatprep.subr.bf16.mxu0 0
  %2014 = vmatpush1.bf16.msra.mxu0 %v1963
  %2015 = vmatprep.subr.bf16.mxu0 0
  %2016 = vmatpush1.bf16.msra.mxu0 %v1964
  %2017 = vmatprep.subr.bf16.mxu0 0
  %2018 = vmatpush1.bf16.msra.mxu0 %v1965
  %2019 = vmatprep.subr.bf16.mxu0 0
  %2020 = vmatpush1.bf16.msra.mxu0 %v1966
  %2021 = vmatprep.subr.bf16.mxu0 0
  %2022 = vmatpush1.bf16.msra.mxu0 %v1967
  %2023 = vmatprep.subr.bf16.mxu0 0
  %2024 = vmatpush1.bf16.msra.mxu0 %v1968
  %2025 = vmatprep.subr.bf16.mxu0 0
  %2026 = vmatpush1.bf16.msra.mxu0 %v1969
  %2027 = vmatprep.subr.bf16.mxu0 0
  %2028 = vmatpush1.bf16.msra.mxu0 %v1970
  %2029 = vmatprep.subr.bf16.mxu0 0
  %2030 = vmatpush1.bf16.msra.mxu0 %v1971
  %2031 = vmatprep.subr.bf16.mxu0 0
  %2032 = vmatpush1.bf16.msra.mxu0 %v1972
  %2033 = vmatprep.subr.bf16.mxu0 0
  %2034 = vmatpush1.bf16.msra.mxu0 %v1973
  %2035 = vmatprep.subr.bf16.mxu0 0
  %2036 = vmatpush1.bf16.msra.mxu0 %v1974
  %2037 = vmatprep.subr.bf16.mxu0 0
  %2038 = vmatpush1.bf16.msra.mxu0 %v1975
  %2039 = vmatprep.subr.bf16.mxu0 0
  %2040 = vmatpush1.bf16.msra.mxu0 %v1976
  %2041 = vmatprep.mubr.bf16.mxu0 %v1815
  %2042 = vmatmul.mubr.bf16.gmra.mrb[0].mxu0 %v1814
  %v2043 = vpop.f32.mrb[0].mxu0
  %v2044 = vadd.f32 0.0, %v2043
  %v2045 = vpop.f32.mrb[0].mxu0
  %v2046 = vpop.f32.mrb[0].mxu0
  %v2047 = vpop.f32.mrb[0].mxu0
  %2048 = vdwg.mxu0
  %2049 = vmatprep.subr.bf16.mxu0 0
  %2050 = vmatpush1.bf16.msra.mxu0 %v1977
  %2051 = vmatprep.subr.bf16.mxu0 0
  %2052 = vmatpush1.bf16.msra.mxu0 %v1978
  %2053 = vmatprep.subr.bf16.mxu0 0
  %2054 = vmatpush1.bf16.msra.mxu0 %v1979
  %2055 = vmatprep.subr.bf16.mxu0 0
  %2056 = vmatpush1.bf16.msra.mxu0 %v1980
  %2057 = vmatprep.subr.bf16.mxu0 0
  %2058 = vmatpush1.bf16.msra.mxu0 %v1981
  %2059 = vmatprep.subr.bf16.mxu0 0
  %2060 = vmatpush1.bf16.msra.mxu0 %v1982
  %2061 = vmatprep.subr.bf16.mxu0 0
  %2062 = vmatpush1.bf16.msra.mxu0 %v1983
  %2063 = vmatprep.subr.bf16.mxu0 0
  %2064 = vmatpush1.bf16.msra.mxu0 %v1984
  %2065 = vmatprep.subr.bf16.mxu0 0
  %2066 = vmatpush1.bf16.msra.mxu0 0
  %2067 = vmatprep.subr.bf16.mxu0 0
  %2068 = vmatpush1.bf16.msra.mxu0 0
  %2069 = vmatprep.subr.bf16.mxu0 0
  %2070 = vmatpush1.bf16.msra.mxu0 0
  %2071 = vmatprep.subr.bf16.mxu0 0
  %2072 = vmatpush1.bf16.msra.mxu0 0
  %2073 = vmatprep.subr.bf16.mxu0 0
  %2074 = vmatpush1.bf16.msra.mxu0 0
  %2075 = vmatprep.subr.bf16.mxu0 0
  %2076 = vmatpush1.bf16.msra.mxu0 0
  %2077 = vmatprep.subr.bf16.mxu0 0
  %2078 = vmatpush1.bf16.msra.mxu0 0
  %2079 = vmatprep.subr.bf16.mxu0 0
  %2080 = vmatpush1.bf16.msra.mxu0 0
  %2081 = vmatprep.mubr.bf16.mxu0 0
  %2082 = vmatmul.mubr.bf16.gmra.mrb[0].mxu0 %v1816
  %v2083 = vpop.f32.mrb[0].mxu0
  %v2084 = vadd.f32 %v2044, %v2083
  %v2085 = vpop.f32.mrb[0].mxu0
  %v2086 = vpop.f32.mrb[0].mxu0
  %v2087 = vpop.f32.mrb[0].mxu0
  %2088 = vdwg.mxu0
  %v2089 = vld [vmem:[%s6] sm:$0x1]
  %v2090 = vld [vmem:[%s7] sm:$0x1]
  %v2091 = vsel %vm1804, %v2084, 0.0
  %v2092 = vrot.slane %v2091, 4
  %v2093 = vadd.f32 %v2091, %v2092
  %v2094 = vrot.slane %v2093, 2
  %v2095 = vadd.f32 %v2093, %v2094
  %v2096 = vrot.slane %v2095, 1
  %v2097 = vadd.f32 %v2095, %v2096
  %v2098 = vrcp.pop 8.0
  %v2099 = vmul.f32 %v2097, %v2098
  %v2100 = vsub.f32 %v2084, %v2099
  %v2101 = vmul.f32 %v2100, %v2100
  %v2102 = vsel %vm1804, %v2101, 0.0
  %v2103 = vrot.slane %v2102, 4
  %v2104 = vadd.f32 %v2102, %v2103
  %v2105 = vrot.slane %v2104, 2
  %v2106 = vadd.f32 %v2104, %v2105
  %v2107 = vrot.slane %v2106, 1
  %v2108 = vadd.f32 %v2106, %v2107
  %v2109 = vmul.f32 %v2108, %v2098
  %v2110 = vadd.f32 %v2109, 1e-05
  %v2111 = vrsqrt.pop %v2110
  %v2112 = vmul.f32 %v2100, %v2111
  %v2114 = vlaneseq
  %v2115 = vshrl.u32 %v2114, 7
  %v2116 = vsub.s32 0, %v2115
  %v2117 = vrot.slane %v2089, %v2116
  %v2119 = vmul.f32 %v2112, %v2117
  %v2121 = vlaneseq
  %v2122 = vshrl.u32 %v2121, 7
  %v2123 = vsub.s32 0, %v2122
  %v2124 = vrot.slane %v2090, %v2123
  %v2126 = vadd.f32 %v2119, %v2124
  %v2127 = vmax.f32 %v2126, 0.0
  %v2128 = vld [vmem:[%s8] sm:$0xff]
  %v2129 = vld [vmem:[%s8 + $0x8] sm:$0xff]
  %v2130 = vld [vmem:[%s8 + $0x10] sm:$0xff]
  %v2131 = vld [vmem:[%s8 + $0x18] sm:$0xff]
  %v2132 = vld [vmem:[%s8 + $0x20] sm:$0xff]
  %vm2133 = vcmask 64512
  %v2135 = vsel %vm2133, %v2128, 0
  %v2138 = vsel %vm2133, %v2129, 0
  %v2141 = vsel %vm2133, %v2130, 0
  %v2144 = vsel %vm2133, %v2131, 0
  %v2147 = vsel %vm2133, %v2132, 0
  %2149 = vmatprep.subr.mxu0 0.0
  %2150 = vmatpush1.msra.mxu0 %v2127
  %2151 = vmatprep.subr.mxu0 0.0
  %2152 = vmatpush1.msra.mxu0 0.0
  %2153 = vmatprep.subr.mxu0 0.0
  %2154 = vmatpush1.msra.mxu0 0.0
  %2155 = vmatprep.subr.mxu0 0.0
  %2156 = vmatpush1.msra.mxu0 0.0
  %2157 = vmatprep.subr.mxu0 0.0
  %2158 = vmatpush1.msra.mxu0 0.0
  %2159 = vmatprep.subr.mxu0 0.0
  %2160 = vmatpush1.msra.mxu0 0.0
  %2161 = vmatprep.subr.mxu0 0.0
  %2162 = vmatpush1.msra.mxu0 0.0
  %2163 = vmatprep.subr.mxu0 0.0
  %2164 = vmatpush1.msra.mxu0 0.0
  %2165 = vmatprep.subr.mxu0 0.0
  %2166 = vmatpush1.msra.mxu0 0.0
  %2167 = vmatprep.subr.mxu0 0.0
  %2168 = vmatpush1.msra.mxu0 0.0
  %2169 = vmatprep.subr.mxu0 0.0
  %2170 = vmatpush1.msra.mxu0 0.0
  %2171 = vmatprep.subr.mxu0 0.0
  %2172 = vmatpush1.msra.mxu0 0.0
  %2173 = vmatprep.subr.mxu0 0.0
  %2174 = vmatpush1.msra.mxu0 0.0
  %2175 = vmatprep.subr.mxu0 0.0
  %2176 = vmatpush1.msra.mxu0 0.0
  %2177 = vmatprep.subr.mxu0 0.0
  %2178 = vmatpush1.msra.mxu0 0.0
  %2179 = vmatprep.subr.mxu0 0.0
  %2180 = vmatpush1.msra.mxu0 0.0
  %2181 = vmatprep.subr.mxu0 0.0
  %2182 = vmatpush1.msra.mxu0 0.0
  %2183 = vmatprep.subr.mxu0 0.0
  %2184 = vmatpush1.msra.mxu0 0.0
  %2185 = vmatprep.subr.mxu0 0.0
  %2186 = vmatpush1.msra.mxu0 0.0
  %2187 = vmatprep.subr.mxu0 0.0
  %2188 = vmatpush1.msra.mxu0 0.0
  %2189 = vmatprep.subr.mxu0 0.0
  %2190 = vmatpush1.msra.mxu0 0.0
  %2191 = vmatprep.subr.mxu0 0.0
  %2192 = vmatpush1.msra.mxu0 0.0
  %2193 = vmatprep.subr.mxu0 0.0
  %2194 = vmatpush1.msra.mxu0 0.0
  %2195 = vmatprep.subr.mxu0 0.0
  %2196 = vmatpush1.msra.mxu0 0.0
  %2197 = vmatprep.subr.mxu0 0.0
  %2198 = vmatpush1.msra.mxu0 0.0
  %2199 = vmatprep.subr.mxu0 0.0
  %2200 = vmatpush1.msra.mxu0 0.0
  %2201 = vmatprep.subr.mxu0 0.0
  %2202 = vmatpush1.msra.mxu0 0.0
  %2203 = vmatprep.subr.mxu0 0.0
  %2204 = vmatpush1.msra.mxu0 0.0
  %2205 = vmatprep.subr.mxu0 0.0
  %2206 = vmatpush1.msra.mxu0 0.0
  %2207 = vmatprep.subr.mxu0 0.0
  %2208 = vmatpush1.msra.mxu0 0.0
  %2209 = vmatprep.subr.mxu0 0.0
  %2210 = vmatpush1.msra.mxu0 0.0
  %2211 = vmatprep.subr.mxu0 0.0
  %2212 = vmatpush1.msra.mxu0 0.0
  %2213 = vmatprep.mubr.f32.mxu0 0.0
  %2214 = vmatmul.mubr.f32.gmra.mrb[0].mxu0 %v2135
  %v2215 = vpop.f32.mrb[0].mxu0
  %v2216 = vadd.f32 0.0, %v2215
  %v2217 = vpop.f32.mrb[0].mxu0
  %2218 = vmatprep.mubr.f32.mxu0 0.0
  %2219 = vmatmul.mubr.f32.gmra.mrb[0].mxu0 %v2138
  %v2220 = vpop.f32.mrb[0].mxu0
  %v2221 = vadd.f32 0.0, %v2220
  %v2222 = vpop.f32.mrb[0].mxu0
  %2223 = vmatprep.mubr.f32.mxu0 0.0
  %2224 = vmatmul.mubr.f32.gmra.mrb[0].mxu0 %v2141
  %v2225 = vpop.f32.mrb[0].mxu0
  %v2226 = vadd.f32 0.0, %v2225
  %v2227 = vpop.f32.mrb[0].mxu0
  %2228 = vmatprep.mubr.f32.mxu0 0.0
  %2229 = vmatmul.mubr.f32.gmra.mrb[0].mxu0 %v2144
  %v2230 = vpop.f32.mrb[0].mxu0
  %v2231 = vadd.f32 0.0, %v2230
  %v2232 = vpop.f32.mrb[0].mxu0
  %2233 = vmatprep.mubr.f32.mxu0 0.0
  %2234 = vmatmul.mubr.f32.gmra.mrb[0].mxu0 %v2147
  %v2235 = vpop.f32.mrb[0].mxu0
  %v2236 = vadd.f32 0.0, %v2235
  %v2237 = vpop.f32.mrb[0].mxu0
  %2238 = vdwg.mxu0
  %2240 = vrot.lane.b32.xlu0 %v2221, 64
  %v2241 = vpop.permute.xlu0 %2240
  %2244 = vrot.lane.b32.xlu0 %v2231, 64
  %v2245 = vpop.permute.xlu0 %2244
  %v2247 = vsel %vm1804, %v2216, %v2241
  %v2248 = vsel %vm1804, %v2226, %v2245
  %v2249 = vpack.c.bf16 %v2247, %v2247
  %v2250 = vpack.c.bf16 %v2248, %v2248
  %v2251 = vpack.c.bf16 %v2236, %v2236
  %v2252 = vld [vmem:[%s9] sm:$0xff]
  %v2253 = vld [vmem:[%s9 + $0x8] sm:$0xff]
  %v2254 = vld [vmem:[%s9 + $0x10] sm:$0xff]
  %v2255 = vld [vmem:[%s9 + $0x18] sm:$0xff]
  %v2256 = vld [vmem:[%s9 + $0x20] sm:$0xff]
  %v2257 = vld [vmem:[%s9 + $0x28] sm:$0xff]
  %v2258 = vld [vmem:[%s9 + $0x30] sm:$0xff]
  %v2259 = vld [vmem:[%s9 + $0x38] sm:$0xff]
  %v2260 = vld [vmem:[%s9 + $0x40] sm:$0xff]
  %v2261 = vld [vmem:[%s9 + $0x48] sm:$0xff]
  %v2262 = vld [vmem:[%s9 + $0x50] sm:$0xff]
  %v2263 = vld [vmem:[%s9 + $0x58] sm:$0xff]
  %v2264 = vld [vmem:[%s9 + $0x60] sm:$0xff]
  %v2265 = vld [vmem:[%s9 + $0x68] sm:$0xff]
  %v2266 = vld [vmem:[%s9 + $0x70] sm:$0xff]
  %v2267 = vld [vmem:[%s9 + $0x78] sm:$0xff]
  %v2268 = vld [vmem:[%s9 + $0x80] sm:$0xff]
  %v2269 = vld [vmem:[%s9 + $0x88] sm:$0xff]
  %v2270 = vld [vmem:[%s9 + $0x90] sm:$0xff]
  %v2271 = vld [vmem:[%s9 + $0x98] sm:$0xff]
  %v2272 = vld [vmem:[%s9 + $0xa0] sm:$0xff]
  %v2273 = vld [vmem:[%s9 + $0xa8] sm:$0xff]
  %v2274 = vld [vmem:[%s9 + $0xb0] sm:$0xff]
  %v2275 = vld [vmem:[%s9 + $0xb8] sm:$0xff]
  %v2276 = vld [vmem:[%s9 + $0xc0] sm:$0xff]
  %v2277 = vld [vmem:[%s9 + $0xc8] sm:$0xff]
  %v2278 = vld [vmem:[%s9 + $0xd0] sm:$0xff]
  %v2279 = vld [vmem:[%s9 + $0xd8] sm:$0xff]
  %v2280 = vld [vmem:[%s9 + $0xe0] sm:$0xff]
  %v2281 = vld [vmem:[%s9 + $0xe8] sm:$0xff]
  %v2282 = vld [vmem:[%s9 + $0xf0] sm:$0xff]
  %v2283 = vld [vmem:[%s9 + $0xf8] sm:$0xff]
  %v2284 = vld [vmem:[%s9 + $0x100] sm:$0xff]
  %v2285 = vld [vmem:[%s9 + $0x108] sm:$0xff]
  %v2286 = vld [vmem:[%s9 + $0x110] sm:$0xff]
  %v2287 = vld [vmem:[%s9 + $0x118] sm:$0xff]
  %v2288 = vld [vmem:[%s9 + $0x120] sm:$0xff]
  %v2289 = vld [vmem:[%s9 + $0x128] sm:$0xff]
  %v2290 = vld [vmem:[%s9 + $0x130] sm:$0xff]
  %v2291 = vld [vmem:[%s9 + $0x138] sm:$0xff]
  %v2292 = vld [vmem:[%s10] sm:$0x3]
  %v2294 = vlaneseq
  %v2295 = vshrl.u32 %v2294, 7
  %v2296 = vsub.s32 0, %v2295
  %v2297 = vrot.slane %v2292, %v2296
  %v2298 = vlaneseq
  %v2299 = vshrl.u32 %v2298, 7
  %v2300 = vsub.s32 1, %v2299
  %v2301 = vrot.slane %v2292, %v2300
  %v2344 = vunpack.c.l.b16 %v2252
  %v2345 = vunpack.c.h.b16 %v2252
  %v2346 = vunpack.c.l.b16 %v2253
  %v2347 = vunpack.c.h.b16 %v2253
  %v2348 = vunpack.c.l.b16 %v2254
  %v2349 = vunpack.c.h.b16 %v2254
  %v2350 = vunpack.c.l.b16 %v2255
  %v2351 = vunpack.c.h.b16 %v2255
  %v2352 = vunpack.c.l.b16 %v2256
  %v2353 = vunpack.c.h.b16 %v2256
  %v2354 = vunpack.c.l.b16 %v2257
  %v2355 = vunpack.c.h.b16 %v2257
  %v2356 = vunpack.c.l.b16 %v2258
  %v2357 = vunpack.c.h.b16 %v2258
  %v2358 = vunpack.c.l.b16 %v2259
  %v2359 = vunpack.c.h.b16 %v2259
  %v2360 = vunpack.c.l.b16 %v2260
  %v2361 = vunpack.c.h.b16 %v2260
  %v2362 = vunpack.c.l.b16 %v2261
  %v2363 = vunpack.c.h.b16 %v2261
  %v2364 = vunpack.c.l.b16 %v2262
  %v2365 = vunpack.c.h.b16 %v2262
  %v2366 = vunpack.c.l.b16 %v2263
  %v2367 = vunpack.c.h.b16 %v2263
  %v2368 = vunpack.c.l.b16 %v2264
  %v2369 = vunpack.c.h.b16 %v2264
  %v2370 = vunpack.c.l.b16 %v2265
  %v2371 = vunpack.c.h.b16 %v2265
  %v2372 = vunpack.c.l.b16 %v2266
  %v2373 = vunpack.c.h.b16 %v2266
  %v2374 = vunpack.c.l.b16 %v2267
  %v2375 = vunpack.c.h.b16 %v2267
  %v2376 = vunpack.c.l.b16 %v2268
  %v2377 = vunpack.c.h.b16 %v2268
  %v2378 = vunpack.c.l.b16 %v2269
  %v2379 = vunpack.c.h.b16 %v2269
  %v2380 = vunpack.c.l.b16 %v2270
  %v2381 = vunpack.c.h.b16 %v2270
  %v2382 = vunpack.c.l.b16 %v2271
  %v2383 = vunpack.c.h.b16 %v2271
  %v2384 = vunpack.c.l.b16 %v2272
  %v2385 = vunpack.c.h.b16 %v2272
  %v2386 = vunpack.c.l.b16 %v2273
  %v2387 = vunpack.c.h.b16 %v2273
  %v2388 = vunpack.c.l.b16 %v2274
  %v2389 = vunpack.c.h.b16 %v2274
  %v2390 = vunpack.c.l.b16 %v2275
  %v2391 = vunpack.c.h.b16 %v2275
  %v2392 = vunpack.c.l.b16 %v2276
  %v2393 = vunpack.c.h.b16 %v2276
  %v2394 = vunpack.c.l.b16 %v2277
  %v2395 = vunpack.c.h.b16 %v2277
  %v2396 = vunpack.c.l.b16 %v2278
  %v2397 = vunpack.c.h.b16 %v2278
  %v2398 = vunpack.c.l.b16 %v2279
  %v2399 = vunpack.c.h.b16 %v2279
  %v2400 = vunpack.c.l.b16 %v2280
  %v2401 = vunpack.c.h.b16 %v2280
  %v2402 = vunpack.c.l.b16 %v2281
  %v2403 = vunpack.c.h.b16 %v2281
  %v2404 = vunpack.c.l.b16 %v2282
  %v2405 = vunpack.c.h.b16 %v2282
  %v2406 = vunpack.c.l.b16 %v2283
  %v2407 = vunpack.c.h.b16 %v2283
  %v2408 = vunpack.c.l.b16 %v2284
  %v2409 = vunpack.c.h.b16 %v2284
  %v2410 = vunpack.c.l.b16 %v2285
  %v2411 = vunpack.c.h.b16 %v2285
  %v2412 = vunpack.c.l.b16 %v2286
  %v2413 = vunpack.c.h.b16 %v2286
  %v2414 = vunpack.c.l.b16 %v2287
  %v2415 = vunpack.c.h.b16 %v2287
  %v2416 = vunpack.c.l.b16 %v2288
  %v2417 = vunpack.c.h.b16 %v2288
  %v2418 = vunpack.c.l.b16 %v2289
  %v2419 = vunpack.c.h.b16 %v2289
  %v2420 = vunpack.c.l.b16 %v2290
  %v2421 = vunpack.c.h.b16 %v2290
  %v2422 = vunpack.c.l.b16 %v2291
  %v2423 = vunpack.c.h.b16 %v2291
  %v2424 = vpack.c.b16 %v2346, %v2344
  %v2425 = vpack.c.b16 %v2347, %v2345
  %v2426 = vpack.c.b16 %v2350, %v2348
  %v2427 = vpack.c.b16 %v2351, %v2349
  %v2428 = vpack.c.b16 %v2354, %v2352
  %v2429 = vpack.c.b16 %v2355, %v2353
  %v2430 = vpack.c.b16 %v2358, %v2356
  %v2431 = vpack.c.b16 %v2359, %v2357
  %v2432 = vpack.c.b16 %v2362, %v2360
  %v2433 = vpack.c.b16 %v2363, %v2361
  %v2434 = vpack.c.b16 %v2366, %v2364
  %v2435 = vpack.c.b16 %v2367, %v2365
  %v2436 = vpack.c.b16 %v2370, %v2368
  %v2437 = vpack.c.b16 %v2371, %v2369
  %v2438 = vpack.c.b16 %v2374, %v2372
  %v2439 = vpack.c.b16 %v2375, %v2373
  %v2440 = vpack.c.b16 %v2378, %v2376
  %v2441 = vpack.c.b16 %v2379, %v2377
  %v2442 = vpack.c.b16 %v2382, %v2380
  %v2443 = vpack.c.b16 %v2383, %v2381
  %v2444 = vpack.c.b16 %v2386, %v2384
  %v2445 = vpack.c.b16 %v2387, %v2385
  %v2446 = vpack.c.b16 %v2390, %v2388
  %v2447 = vpack.c.b16 %v2391, %v2389
  %v2448 = vpack.c.b16 %v2394, %v2392
  %v2449 = vpack.c.b16 %v2395, %v2393
  %v2450 = vpack.c.b16 %v2398, %v2396
  %v2451 = vpack.c.b16 %v2399, %v2397
  %v2452 = vpack.c.b16 %v2402, %v2400
  %v2453 = vpack.c.b16 %v2403, %v2401
  %v2454 = vpack.c.b16 %v2406, %v2404
  %v2455 = vpack.c.b16 %v2407, %v2405
  %v2456 = vpack.c.b16 %v2410, %v2408
  %v2457 = vpack.c.b16 %v2411, %v2409
  %v2458 = vpack.c.b16 %v2414, %v2412
  %v2459 = vpack.c.b16 %v2415, %v2413
  %v2460 = vpack.c.b16 %v2418, %v2416
  %v2461 = vpack.c.b16 %v2419, %v2417
  %v2462 = vpack.c.b16 %v2422, %v2420
  %v2463 = vpack.c.b16 %v2423, %v2421
  %v2505 = vsel %vm1804, %v2251, 0
  %2507 = vmatprep.subr.bf16.mxu0 %v2425
  %2508 = vmatpush1.bf16.msra.mxu0 %v2424
  %2509 = vmatprep.subr.bf16.mxu0 %v2427
  %2510 = vmatpush1.bf16.msra.mxu0 %v2426
  %2511 = vmatprep.subr.bf16.mxu0 %v2429
  %2512 = vmatpush1.bf16.msra.mxu0 %v2428
  %2513 = vmatprep.subr.bf16.mxu0 %v2431
  %2514 = vmatpush1.bf16.msra.mxu0 %v2430
  %2515 = vmatprep.subr.bf16.mxu0 %v2433
  %2516 = vmatpush1.bf16.msra.mxu0 %v2432
  %2517 = vmatprep.subr.bf16.mxu0 %v2435
  %2518 = vmatpush1.bf16.msra.mxu0 %v2434
  %2519 = vmatprep.subr.bf16.mxu0 %v2437
  %2520 = vmatpush1.bf16.msra.mxu0 %v2436
  %2521 = vmatprep.subr.bf16.mxu0 %v2439
  %2522 = vmatpush1.bf16.msra.mxu0 %v2438
  %2523 = vmatprep.subr.bf16.mxu0 %v2441
  %2524 = vmatpush1.bf16.msra.mxu0 %v2440
  %2525 = vmatprep.subr.bf16.mxu0 %v2443
  %2526 = vmatpush1.bf16.msra.mxu0 %v2442
  %2527 = vmatprep.subr.bf16.mxu0 %v2445
  %2528 = vmatpush1.bf16.msra.mxu0 %v2444
  %2529 = vmatprep.subr.bf16.mxu0 %v2447
  %2530 = vmatpush1.bf16.msra.mxu0 %v2446
  %2531 = vmatprep.subr.bf16.mxu0 %v2449
  %2532 = vmatpush1.bf16.msra.mxu0 %v2448
  %2533 = vmatprep.subr.bf16.mxu0 %v2451
  %2534 = vmatpush1.bf16.msra.mxu0 %v2450
  %2535 = vmatprep.subr.bf16.mxu0 %v2453
  %2536 = vmatpush1.bf16.msra.mxu0 %v2452
  %2537 = vmatprep.subr.bf16.mxu0 %v2455
  %2538 = vmatpush1.bf16.msra.mxu0 %v2454
  %2539 = vmatprep.mubr.bf16.mxu0 %v2250
  %2540 = vmatmul.mubr.bf16.gmra.mrb[0].mxu0 %v2249
  %v2541 = vpop.f32.mrb[0].mxu0
  %v2542 = vadd.f32 %v2297, %v2541
  %v2543 = vpop.f32.mrb[0].mxu0
  %v2544 = vadd.f32 %v2301, %v2543
  %v2545 = vpop.f32.mrb[0].mxu0
  %v2546 = vpop.f32.mrb[0].mxu0
  %2547 = vdwg.mxu0
  %2548 = vmatprep.subr.bf16.mxu0 %v2457
  %2549 = vmatpush1.bf16.msra.mxu0 %v2456
  %2550 = vmatprep.subr.bf16.mxu0 %v2459
  %2551 = vmatpush1.bf16.msra.mxu0 %v2458
  %2552 = vmatprep.subr.bf16.mxu0 %v2461
  %2553 = vmatpush1.bf16.msra.mxu0 %v2460
  %2554 = vmatprep.subr.bf16.mxu0 %v2463
  %2555 = vmatpush1.bf16.msra.mxu0 %v2462
  %2556 = vmatprep.subr.bf16.mxu0 0
  %2557 = vmatpush1.bf16.msra.mxu0 0
  %2558 = vmatprep.subr.bf16.mxu0 0
  %2559 = vmatpush1.bf16.msra.mxu0 0
  %2560 = vmatprep.subr.bf16.mxu0 0
  %2561 = vmatpush1.bf16.msra.mxu0 0
  %2562 = vmatprep.subr.bf16.mxu0 0
  %2563 = vmatpush1.bf16.msra.mxu0 0
  %2564 = vmatprep.subr.bf16.mxu0 0
  %2565 = vmatpush1.bf16.msra.mxu0 0
  %2566 = vmatprep.subr.bf16.mxu0 0
  %2567 = vmatpush1.bf16.msra.mxu0 0
  %2568 = vmatprep.subr.bf16.mxu0 0
  %2569 = vmatpush1.bf16.msra.mxu0 0
  %2570 = vmatprep.subr.bf16.mxu0 0
  %2571 = vmatpush1.bf16.msra.mxu0 0
  %2572 = vmatprep.subr.bf16.mxu0 0
  %2573 = vmatpush1.bf16.msra.mxu0 0
  %2574 = vmatprep.subr.bf16.mxu0 0
  %2575 = vmatpush1.bf16.msra.mxu0 0
  %2576 = vmatprep.subr.bf16.mxu0 0
  %2577 = vmatpush1.bf16.msra.mxu0 0
  %2578 = vmatprep.subr.bf16.mxu0 0
  %2579 = vmatpush1.bf16.msra.mxu0 0
  %2580 = vmatprep.mubr.bf16.mxu0 0
  %2581 = vmatmul.mubr.bf16.gmra.mrb[0].mxu0 %v2505
  %v2582 = vpop.f32.mrb[0].mxu0
  %v2583 = vadd.f32 %v2542, %v2582
  %v2584 = vpop.f32.mrb[0].mxu0
  %v2585 = vadd.f32 %v2544, %v2584
  %v2586 = vpop.f32.mrb[0].mxu0
  %v2587 = vpop.f32.mrb[0].mxu0
  %2588 = vdwg.mxu0
  %2589 = vst [vmem:[%s11] sm:$0xff] %v2583
  %2590 = vst [vmem:[%s11 + $0x8] sm:$0xff] %v2585
  // Predicated region
  $region46: #{audio_encoder_forward.1} parent=0 // pred_check
    _
  $region47: #{audio_encoder_forward.1} parent=0 // pred_check_branch
    %2592 = sbr.rel (0) target = $region49
  $region48: #{audio_encoder_forward.1} parent=0 // pred_region
    _
  $region49: #{audio_encoder_forward.1} parent=0 // pred_fallthru
    _
  // Predicated region
  $region50: #{audio_encoder_forward.1} parent=0 // pred_check
    _
  $region51: #{audio_encoder_forward.1} parent=0 // pred_check_branch
    %2594 = sbr.rel (0) target = $region53
  $region52: #{audio_encoder_forward.1} parent=0 // pred_region
    _
  $region53: #{audio_encoder_forward.1} parent=0 // pred_fallthru
    _

</llo_original>
